<compile_context>
chip_gen: v7x
topology: tpu7x:2x2x1
jax: 0.10.0
libtpu: 0.0.40
codegen_flags: <defaults>
</compile_context>

<pallas_src>
import functools
import math

import numpy as np
import jax
import jax.numpy as jnp
from jax import lax
from jax.experimental import pallas as pl
from jax.experimental.pallas import tpu as pltpu


# ----------------------------------------------------------------------------- #
# Bicubic interpolation matrix (PyTorch 'bicubic', align_corners=False,
# coordinate_transformation_mode='pytorch_half_pixel', cubic_coeff_a=-0.75).
# NOTE: uses the user-supplied scale directly; exact for integer scale factors.
# ----------------------------------------------------------------------------- #
def _bicubic_weight_matrix(in_size, out_size, scale, a=-0.75):
    def c1(x):  # |x| <= 1
        return ((a + 2.0) * x - (a + 3.0)) * x * x + 1.0

    def c2(x):  # 1 < |x| < 2
        return (((x - 5.0) * x + 8.0) * x - 4.0) * a

    m = np.zeros((out_size, in_size), dtype=np.float64)
    for i in range(out_size):
        src = (i + 0.5) / scale - 0.5          # half-pixel transform
        i0 = int(math.floor(src))
        t = src - i0
        w = [c2(t + 1.0), c1(t), c1(1.0 - t), c2(2.0 - t)]
        for k in range(4):
            idx = min(max(i0 - 1 + k, 0), in_size - 1)   # border clamp (PyTorch)
            m[i, idx] += w[k]
    return m.astype(np.float32)


def _kron_col_matrix(mw, cin, cpad):
    """Column-interp matrix expanded over channels: (W*cin, Wo*cpad).

    bk[w*cin + c, j*cpad + c] = mw[j, w]; extra output channels (c >= cin) stay 0,
    so the upsampled image comes out channels-last with Cin padded to `cpad`.
    """
    Wo, W = mw.shape
    bk = np.zeros((W * cin, Wo * cpad), dtype=np.float32)
    for c in range(cin):
        bk[c::cin, c::cpad] = mw.T
    return bk


# ----------------------------------------------------------------------------- #
# Pallas kernels
# ----------------------------------------------------------------------------- #
def _resize_pad_kernel(x_ref, mh_ref, bk_ref, o_ref, *, PH, PW, C4):
    # x_ref : (1, H, W*C)       f32  NHWC-flattened input image
    # mh_ref: (Ho, H)           f32  height interpolation matrix
    # bk_ref: (W*C, Wo*C4)      f32  width interpolation matrix (Kron over channels)
    # o_ref : (1, Hp1, Wp1, C4) f32  upsampled image, zero-padded by PH/PW for conv1
    Ho = mh_ref.shape[0]
    Wo = bk_ref.shape[1] // C4
    t = jnp.dot(x_ref[0], bk_ref[...], preferred_element_type=jnp.float32)   # (H, Wo*C4)
    u = jnp.dot(mh_ref[...], t, preferred_element_type=jnp.float32)          # (Ho, Wo*C4)
    o_ref[...] = jnp.zeros_like(o_ref)
    o_ref[0, PH:PH + Ho, PW:PW + Wo, :] = u.reshape(Ho, Wo, C4)


def _conv1_conv2_kernel(x_ref, w1_ref, b1_ref, w2_ref, b2_ref, o_ref, patch_ref,
                        *, TH, KH, KW, PH, PW):
    # Fused conv1(9x9, pad 4) + ReLU + conv2(1x1) + ReLU on one row tile.
    # x_ref : (1, Hp1, Wp1, C4) f32   resident padded upsampled image
    # w1_ref: (KH*KW*C4, C1)    bf16  conv1 weights, im2col order (kh, kw, ci)
    # b1_ref: (1, C1)           f32
    # w2_ref: (C1, C2)          bf16
    # b2_ref: (1, C2)           f32
    # o_ref : (1, Hp3, Wp3, C2) bf16  resident output, zero-padded for conv3
    # patch_ref: VMEM (TH*Wo, KH*KW*C4) bf16 im2col scratch
    t = pl.program_id(1)
    C4 = x_ref.shape[3]
    Wo = x_ref.shape[2] - (KW - 1)
    C2 = o_ref.shape[3]

    @pl.when(t == 0)
    def _zero_padding():
        o_ref[...] = jnp.zeros_like(o_ref)

    base = t * TH
    # Build the im2col patch: taps folded into the contraction dimension.
    for kh in range(KH):
        for kw in range(KW):
            j0 = (kh * KW + kw) * C4
            piece = x_ref[0, pl.ds(base + kh, TH), kw:kw + Wo, :]     # (TH, Wo, C4) f32
            patch_ref[:, j0:j0 + C4] = (
                piece.reshape(TH * Wo, C4).astype(patch_ref.dtype))

    # conv1: single big-K matmul (bf16 operands, f32 accumulation), epilogue in f32.
    h1 = jnp.dot(patch_ref[...], w1_ref[...], preferred_element_type=jnp.float32)
    h1 = jnp.maximum(h1 + b1_ref[...], 0.0)                           # (TH*Wo, C1) f32
    # conv2 (1x1) fused in: the 64-channel intermediate never leaves VMEM.
    h2 = jnp.dot(h1.astype(jnp.bfloat16), w2_ref[...],
                 preferred_element_type=jnp.float32)
    h2 = jnp.maximum(h2 + b2_ref[...], 0.0)                           # (TH*Wo, C2) f32
    o_ref[0, pl.ds(PH + base, TH), PW:PW + Wo, :] = (
        h2.reshape(TH, Wo, C2).astype(o_ref.dtype))


def _conv3_kernel(x_ref, w3_ref, b3_ref, o_ref, patch_ref, *, TH, KH, KW):
    # conv3(5x5, pad 2); writes NCHW directly (W on lanes -> lane-dense stores).
    # x_ref : (1, Hp3, Wp3, C2) bf16  resident zero-padded conv2 output
    # w3_ref: (KH*KW*C2, C3)    bf16
    # b3_ref: (1, C3)           f32
    # o_ref : (1, C3, TH, Wo)   f32   NCHW output tile
    # patch_ref: VMEM (TH*Wo, KH*KW*C2) bf16 im2col scratch
    t = pl.program_id(1)
    C2 = x_ref.shape[3]
    Wo = x_ref.shape[2] - (KW - 1)
    C3 = o_ref.shape[1]

    base = t * TH
    for kh in range(KH):
        for kw in range(KW):
            j0 = (kh * KW + kw) * C2
            piece = x_ref[0, pl.ds(base + kh, TH), kw:kw + Wo, :]     # (TH, Wo, C2) bf16
            patch_ref[:, j0:j0 + C2] = piece.reshape(TH * Wo, C2)

    acc = jnp.dot(patch_ref[...], w3_ref[...], preferred_element_type=jnp.float32)
    out = (acc + b3_ref[...]).reshape(TH, Wo, C3)                     # f32
    for c in range(C3):
        o_ref[0, c, :, :] = out[:, :, c].astype(o_ref.dtype)


# ----------------------------------------------------------------------------- #
# Wrapper / parameters
# ----------------------------------------------------------------------------- #
def init_params(key):
    k1, k2, k3, kb1, kb2, kb3 = jax.random.split(key, 6)
    return {
        # HWIO weights (synthetic, deterministic)
        "w1": jax.random.normal(k1, (9, 9, 3, 64), jnp.float32) * 0.05,
        "b1": jax.random.normal(kb1, (64,), jnp.float32) * 0.01,
        "w2": jax.random.normal(k2, (1, 1, 64, 32), jnp.float32) * 0.05,
        "b2": jax.random.normal(kb2, (32,), jnp.float32) * 0.01,
        "w3": jax.random.normal(k3, (5, 5, 32, 3), jnp.float32) * 0.05,
        "b3": jax.random.normal(kb3, (3,), jnp.float32) * 0.01,
    }


def strange_sr_forward_pallas(params, x_nchw, upscale_factor):
    # upscale_factor mirrors torch.tensor([1,1,sh,sw]); last two entries are used and
    # must be static (they determine output shapes), exactly as in the ONNX export.
    scales = np.asarray(upscale_factor, dtype=np.float64).reshape(-1)[-2:]
    N, C, H, W = x_nchw.shape
    assert C == 3, "StrangeSuperResolutionNet expects 3 input channels"
    Ho = int(math.floor(H * float(scales[0])))
    Wo = int(math.floor(W * float(scales[1])))

    C4 = 4                      # conv1 Cin padded 3 -> 4 for aligned im2col lanes
    C1, C2, C3 = 64, 32, 3
    K1, K3 = 9, 5
    P1, P3 = K1 // 2, K3 // 2
    Hp1, Wp1 = Ho + 2 * P1, Wo + 2 * P1
    Hp3, Wp3 = Ho + 2 * P3, Wo + 2 * P3

    # Static interpolation matrices.
    mh = _bicubic_weight_matrix(H, Ho, float(scales[0]))              # (Ho, H)
    mw = _bicubic_weight_matrix(W, Wo, float(scales[1]))              # (Wo, W)
    bk = _kron_col_matrix(mw, C, C4)                                  # (W*C, Wo*C4)

    # Fold / cast weights for the MXU (bf16 operands, f32 accumulation & epilogue).
    w1p = jnp.pad(params["w1"], ((0, 0), (0, 0), (0, C4 - C), (0, 0)))
    w1f = w1p.reshape(K1 * K1 * C4, C1).astype(jnp.bfloat16)
    w2f = params["w2"].reshape(C1, C2).astype(jnp.bfloat16)
    w3f = params["w3"].reshape(K3 * K3 * C2, C3).astype(jnp.bfloat16)
    b1r = params["b1"].reshape(1, C1).astype(jnp.float32)
    b2r = params["b2"].reshape(1, C2).astype(jnp.float32)
    b3r = params["b3"].reshape(1, C3).astype(jnp.float32)

    # Tiny relayout of the *network input* only (a few KiB); all large activations
    # keep kernel-chosen layouts -- no wrapper transpose / pad passes on them.
    x_flat = jnp.transpose(x_nchw, (0, 2, 3, 1)).reshape(N, H, W * C).astype(jnp.float32)

    # ---- bicubic upsample -> zero-padded NHWC(4) image, ready for conv1 ----
    xpad = pl.pallas_call(
        functools.partial(_resize_pad_kernel, PH=P1, PW=P1, C4=C4),
        out_shape=jax.ShapeDtypeStruct((N, Hp1, Wp1, C4), jnp.float32),
        grid=(N,),
        in_specs=[
            pl.BlockSpec((1, H, W * C), lambda n: (n, 0, 0)),
            pl.BlockSpec((Ho, H), lambda n: (0, 0)),
            pl.BlockSpec((W * C, Wo * C4), lambda n: (0, 0)),
        ],
        out_specs=pl.BlockSpec((1, Hp1, Wp1, C4), lambda n: (n, 0, 0, 0)),
        compiler_params=pltpu.CompilerParams(dimension_semantics=("parallel",)),
    )(x_flat, jnp.asarray(mh), jnp.asarray(bk))

    # Row-tile height for the convolution kernels.
    TH = 8 if Ho % 8 == 0 else Ho
    T = Ho // TH

    # ---- conv1(9x9)+ReLU + conv2(1x1)+ReLU fused; emits conv3's padded input ----
    h2pad = pl.pallas_call(
        functools.partial(_conv1_conv2_kernel, TH=TH, KH=K1, KW=K1, PH=P3, PW=P3),
        out_shape=jax.ShapeDtypeStruct((N, Hp3, Wp3, C2), jnp.bfloat16),
        grid=(N, T),
        in_specs=[
            pl.BlockSpec((1, Hp1, Wp1, C4), lambda n, t: (n, 0, 0, 0)),
            pl.BlockSpec((K1 * K1 * C4, C1), lambda n, t: (0, 0)),
            pl.BlockSpec((1, C1), lambda n, t: (0, 0)),
            pl.BlockSpec((C1, C2), lambda n, t: (0, 0)),
            pl.BlockSpec((1, C2), lambda n, t: (0, 0)),
        ],
        # Output block is revisited across the row-tile axis (it holds the zero
        # padding), so that axis is "arbitrary".
        out_specs=pl.BlockSpec((1, Hp3, Wp3, C2), lambda n, t: (n, 0, 0, 0)),
        scratch_shapes=[pltpu.VMEM((TH * Wo, K1 * K1 * C4), jnp.bfloat16)],
        compiler_params=pltpu.CompilerParams(
            dimension_semantics=("parallel", "arbitrary")),
    )(xpad, w1f, b1r, w2f, b2r)

    # ---- conv3(5x5), NCHW output written directly (no wrapper transpose) ----
    out = pl.pallas_call(
        functools.partial(_conv3_kernel, TH=TH, KH=K3, KW=K3),
        out_shape=jax.ShapeDtypeStruct((N, C3, Ho, Wo), jnp.float32),
        grid=(N, T),
        in_specs=[
            pl.BlockSpec((1, Hp3, Wp3, C2), lambda n, t: (n, 0, 0, 0)),
            pl.BlockSpec((K3 * K3 * C2, C3), lambda n, t: (0, 0)),
            pl.BlockSpec((1, C3), lambda n, t: (0, 0)),
        ],
        out_specs=pl.BlockSpec((1, C3, TH, Wo), lambda n, t: (n, 0, t, 0)),
        scratch_shapes=[pltpu.VMEM((TH * Wo, K3 * K3 * C2), jnp.bfloat16)],
        compiler_params=pltpu.CompilerParams(
            dimension_semantics=("parallel", "parallel")),
    )(h2pad, w3f, b3r)
    return out


# ----------------------------------------------------------------------------- #
# Pure-JAX reference (same interpolation matrices, lax conv) for a sanity check.
# ----------------------------------------------------------------------------- #
def strange_sr_forward_reference(params, x_nchw, upscale_factor):
    scales = np.asarray(upscale_factor, dtype=np.float64).reshape(-1)[-2:]
    N, C, H, W = x_nchw.shape
    Ho = int(math.floor(H * float(scales[0])))
    Wo = int(math.floor(W * float(scales[1])))
    mh = jnp.asarray(_bicubic_weight_matrix(H, Ho, float(scales[0])))
    mwt = jnp.asarray(_bicubic_weight_matrix(W, Wo, float(scales[1])).T)
    x_up = jnp.einsum("oh,nchw,wp->ncop", mh, x_nchw, mwt)
    x_up = jnp.transpose(x_up, (0, 2, 3, 1))

    def conv(x, w, b, relu):
        kh, kw = w.shape[0], w.shape[1]
        out = lax.conv_general_dilated(
            x, w, (1, 1), [(kh // 2, kh // 2), (kw // 2, kw // 2)],
            dimension_numbers=("NHWC", "HWIO", "NHWC"))
        out = out + b
        return jnp.maximum(out, 0.0) if relu else out

    h = conv(x_up, params["w1"], params["b1"], True)
    h = conv(h, params["w2"], params["b2"], True)
    h = conv(h, params["w3"], params["b3"], False)
    return jnp.transpose(h, (0, 3, 1, 2))


if __name__ == "__main__":
    key = jax.random.PRNGKey(0)
    kx, kp = jax.random.split(key)
    N, C, H, W = 2, 3, 16, 16
    x = jax.random.normal(kx, (N, C, H, W), jnp.float32)
    upscale_factor = np.array([1.0, 1.0, 2.0, 2.0], np.float32)  # like torch.tensor
    params = init_params(kp)

    out = strange_sr_forward_pallas(params, x, upscale_factor)
    out = jax.block_until_ready(out)
    assert out.shape == (N, 3, 32, 32), out.shape

    ref = strange_sr_forward_reference(params, x, upscale_factor)
    # Loose tolerance: conv matmuls use bf16 MXU operands (f32 accumulation) vs the
    # f32 XLA reference.
    np.testing.assert_allclose(np.asarray(out), np.asarray(ref), rtol=5e-2, atol=5e-2)

    print("KERNEL_OK")
</pallas_src>

<mosaic_0001>
module attributes {stable_mosaic.version = 11 : i64} {
  func.func @_resize_pad_kernel(%arg0: i32, %arg1: memref<1x16x48xf32, #tpu.memory_space<vmem>>, %arg2: memref<32x16xf32, #tpu.memory_space<vmem>>, %arg3: memref<48x128xf32, #tpu.memory_space<vmem>>, %arg4: memref<1x40x40x4xf32, #tpu.memory_space<vmem>>) attributes {dimension_semantics = [#tpu.dimension_semantics<parallel>], iteration_bounds = array<i64: 2>, scalar_prefetch = 0 : i64, scratch_operands = 0 : i64, tpu.core_type = #tpu.core_type<tc>, window_params = [{transform_indices = @transform_0, window_bounds = array<i64: 1, 16, 48>}, {pipeline_mode = #tpu.pipeline_mode<synchronous>, transform_indices = @transform_1, window_bounds = array<i64: 32, 16>}, {pipeline_mode = #tpu.pipeline_mode<synchronous>, transform_indices = @transform_2, window_bounds = array<i64: 48, 128>}, {transform_indices = @transform_3, window_bounds = array<i64: 1, 40, 40, 4>}]} {
    %c0 = arith.constant 0 : index
    %c0_0 = arith.constant 0 : index
    %c0_1 = arith.constant 0 : index
    %0 = vector.load %arg1[%c0, %c0_0, %c0_1] : memref<1x16x48xf32, #tpu.memory_space<vmem>>, vector<1x16x48xf32>
    %1 = vector.shape_cast %0 : vector<1x16x48xf32> to vector<16x48xf32>
    %c0_2 = arith.constant 0 : index
    %c0_3 = arith.constant 0 : index
    %2 = vector.load %arg3[%c0_2, %c0_3] : memref<48x128xf32, #tpu.memory_space<vmem>>, vector<48x128xf32>
    %cst = arith.constant dense<0.000000e+00> : vector<16x128xf32>
    %3 = tpu.matmul %1, %2, %cst {dimension_numbers = #tpu.dot_dimension_numbers<[1], [0], [0], [1], [0, 0, 1, 1], [], []>} : vector<16x48xf32>, vector<48x128xf32>, vector<16x128xf32> -> vector<16x128xf32>
    %c0_4 = arith.constant 0 : index
    %c0_5 = arith.constant 0 : index
    %4 = vector.load %arg2[%c0_4, %c0_5] : memref<32x16xf32, #tpu.memory_space<vmem>>, vector<32x16xf32>
    %cst_6 = arith.constant dense<0.000000e+00> : vector<32x128xf32>
    %5 = tpu.matmul %4, %3, %cst_6 {dimension_numbers = #tpu.dot_dimension_numbers<[1], [0], [0], [1], [0, 0, 1, 1], [], []>} : vector<32x16xf32>, vector<16x128xf32>, vector<32x128xf32> -> vector<32x128xf32>
    %cst_7 = arith.constant 0.000000e+00 : f32
    %6 = vector.broadcast %cst_7 : f32 to vector<1x40x40x4xf32>
    %c0_8 = arith.constant 0 : index
    %c0_9 = arith.constant 0 : index
    %c0_10 = arith.constant 0 : index
    %c0_11 = arith.constant 0 : index
    %7 = vector.load %arg4[%c0_8, %c0_9, %c0_10, %c0_11] : memref<1x40x40x4xf32, #tpu.memory_space<vmem>>, vector<1x40x40x4xf32>
    tpu.vector_store %arg4[%c0_8, %c0_9, %c0_10, %c0_11], %6 {strides = array<i32>} : memref<1x40x40x4xf32, #tpu.memory_space<vmem>>, vector<1x40x40x4xf32>,
    %8 = vector.shape_cast %5 : vector<32x128xf32> to vector<32x32x4xf32>
    %c0_12 = arith.constant 0 : index
    %c4 = arith.constant 4 : index
    %c4_13 = arith.constant 4 : index
    %c0_14 = arith.constant 0 : index
    %9 = vector.load %arg4[%c0_12, %c4, %c4_13, %c0_14] : memref<1x40x40x4xf32, #tpu.memory_space<vmem>>, vector<1x32x32x4xf32>
    %10 = vector.shape_cast %9 : vector<1x32x32x4xf32> to vector<32x32x4xf32>
    %11 = vector.shape_cast %8 : vector<32x32x4xf32> to vector<1x32x32x4xf32>
    tpu.vector_store %arg4[%c0_12, %c4, %c4_13, %c0_14], %11 {strides = array<i32>} : memref<1x40x40x4xf32, #tpu.memory_space<vmem>>, vector<1x32x32x4xf32>,
    return
  }
  func.func @transform_0(%arg0: i32) -> (i32, i32, i32) {
    %c0_i32 = arith.constant 0 : i32
    %c0_i32_0 = arith.constant 0 : i32
    %c0_i32_1 = arith.constant 0 : i32
    return %arg0, %c0_i32, %c0_i32_0 : i32, i32, i32
  }
  func.func @transform_1(%arg0: i32) -> (i32, i32) {
    %c0_i32 = arith.constant 0 : i32
    %c0_i32_0 = arith.constant 0 : i32
    %c0_i32_1 = arith.constant 0 : i32
    return %c0_i32, %c0_i32_0 : i32, i32
  }
  func.func @transform_2(%arg0: i32) -> (i32, i32) {
    %c0_i32 = arith.constant 0 : i32
    %c0_i32_0 = arith.constant 0 : i32
    %c0_i32_1 = arith.constant 0 : i32
    return %c0_i32, %c0_i32_0 : i32, i32
  }
  func.func @transform_3(%arg0: i32) -> (i32, i32, i32, i32) {
    %c0_i32 = arith.constant 0 : i32
    %c0_i32_0 = arith.constant 0 : i32
    %c0_i32_1 = arith.constant 0 : i32
    %c0_i32_2 = arith.constant 0 : i32
    return %arg0, %c0_i32, %c0_i32_0, %c0_i32_1 : i32, i32, i32, i32
  }
}

</mosaic_0001>

<llo_original>
// kernel: tpu_custom_call.1
$region0: #{tpu_custom_call.1}
  #allocation0 [shape = 'u32[]', space=smem, size = 0x4, offset = 0x4, fixed_abs, tag = 'smem constant byte address 0x4 - core index']
  #allocation1 [shape = 'u32[144,128]{1,0:T(1,128)}', space=vmem, size = 0x12000, scoped, tag = 'internal scratch']
  %s0 = inlined_call_operand.hbm [shape: f32[2,16,48], index: 0, kind: input, shape index: {}]
  %s1 = inlined_call_operand.vmem [shape: f32[32,16], index: 1, kind: input, shape index: {}]
  %s2 = inlined_call_operand.hbm [shape: f32[48,128], index: 2, kind: input, shape index: {}]
  %s3 = inlined_call_operand.vmem [shape: f32[2,40,40,4], index: 3, kind: output, shape index: {}]
  %s4 = sld [smem:[#allocation0]]
  $region53: #{tpu_custom_call.1} parent=0
    _
  %s6 = ssub.s32 1, %s4
  %s7 = scalar_select 0, %s6, %s4
  $region1: #{tpu_custom_call.1} parent=0
    #allocation2 [shape = 'u8[16384]{0}', space=vmem, size = 0x4000, scoped, tag = 'input window, operand 0']
    #allocation3 [shape = 's32[2]{0}', space=sflag, size = 0x8, scoped, tag = 'scoped memory for tpu_custom_call.1']
    #allocation4 [shape = 'u8[24576]{0}', space=vmem, size = 0x6000, scoped, tag = 'input window, operand 2, single buffered']
    #allocation5 [shape = 's32[1]{0}', space=sflag, size = 0x4, scoped, tag = 'scoped memory for tpu_custom_call.1']
    %8 = vsyncpa [#allocation3], 0
    %s9 = scalar_lea.sflag [#allocation3], 1
    %10 = vsyncpa %s9, 0
    %11 = vsyncpa [#allocation5], 0
    loop: start=0, step=1, limit=4
    $region2: #{tpu_custom_call.1} parent=1 // loop_pre_header
      _
    $region3: #{tpu_custom_call.1} parent=1 // loop_header
      %s13 = sphi 0, %s17
      %p14 = scmp.ge.s32.totalorder %s13, 4
      %s23 = sphi 0, %s25
      %s26 = sphi 0, %s23
      %s27 = sphi 0, %s26
      %s43 = sphi 0, %s27
      %s47 = sphi 0, %s47
      %s49 = sphi 0, %s47
      %s50 = sphi 0, %s49
      %s64 = sphi 0, %s50
      %s68 = sphi 0, %s68
      %s70 = sphi 0, %s68
      %s71 = sphi 0, %s70
      %s85 = sphi 0, %s71
      %s91 = sphi 0, %s93
      %s94 = sphi 0, %s91
      %s95 = sphi 0, %s94
      %s111 = sphi 0, %s95
    $region4: #{tpu_custom_call.1} parent=1 // loop_header_branch
      %16 = sbr.rel (%p14) target = $region8
    $region5: #{tpu_custom_call.1} parent=1 // loop_body
      %s18 = ssub.s32 %s13, 1
      %s19 = ssub.s32 %s13, 2
      %s20 = sadd.s32 %s13, 1
      %s21 = ssub.s32 %s13, %s20
      %p22 = scmp.eq.s32.totalorder %s21, 0
      %s24 = sadd.s32 %s23, 1
      %s25 = scalar_select %p22, %s23, %s24
      %p28 = pneg %p22
      %p29 = scmp.eq.s32.totalorder %s13, 1
      %p30 = por %p28, %p29
      %p31 = scmp.ne.s32.totalorder %s23, %s26
      %p32 = scmp.eq.s32.totalorder %s13, 0
      %p33 = por %p31, %p32
      %p34 = scmp.ne.s32.totalorder %s23, %s26
      %p35 = scmp.eq.s32.totalorder %s18, 1
      %p36 = por %p34, %p35
      %p37 = scmp.ne.s32.totalorder %s26, %s27
      %p38 = scmp.eq.s32.totalorder %s18, 0
      %p39 = por %p37, %p38
      %p40 = scmp.ne.s32.totalorder %s26, %s27
      %p41 = scmp.eq.s32.totalorder %s19, 1
      %p42 = por %p40, %p41
      %p44 = scmp.ne.s32.totalorder %s27, %s43
      %p45 = scmp.eq.s32.totalorder %s19, 0
      %p46 = por %p44, %p45
      %s48 = sadd.s32 %s47, 1
      %p51 = scmp.eq.s32.totalorder %s13, 1
      %p52 = scmp.ne.s32.totalorder %s47, %s49
      %p53 = scmp.eq.s32.totalorder %s13, 0
      %p54 = por %p52, %p53
      %p55 = scmp.ne.s32.totalorder %s47, %s49
      %p56 = scmp.eq.s32.totalorder %s18, 1
      %p57 = por %p55, %p56
      %p58 = scmp.ne.s32.totalorder %s49, %s50
      %p59 = scmp.eq.s32.totalorder %s18, 0
      %p60 = por %p58, %p59
      %p61 = scmp.ne.s32.totalorder %s49, %s50
      %p62 = scmp.eq.s32.totalorder %s19, 1
      %p63 = por %p61, %p62
      %p65 = scmp.ne.s32.totalorder %s50, %s64
      %p66 = scmp.eq.s32.totalorder %s19, 0
      %p67 = por %p65, %p66
      %s69 = sadd.s32 %s68, 1
      %p72 = scmp.eq.s32.totalorder %s13, 1
      %p73 = scmp.ne.s32.totalorder %s68, %s70
      %p74 = scmp.eq.s32.totalorder %s13, 0
      %p75 = por %p73, %p74
      %p76 = scmp.ne.s32.totalorder %s68, %s70
      %p77 = scmp.eq.s32.totalorder %s18, 1
      %p78 = por %p76, %p77
      %p79 = scmp.ne.s32.totalorder %s70, %s71
      %p80 = scmp.eq.s32.totalorder %s18, 0
      %p81 = por %p79, %p80
      %p82 = scmp.ne.s32.totalorder %s70, %s71
      %p83 = scmp.eq.s32.totalorder %s19, 1
      %p84 = por %p82, %p83
      %p86 = scmp.ne.s32.totalorder %s71, %s85
      %p87 = scmp.eq.s32.totalorder %s19, 0
      %p88 = por %p86, %p87
      %s89 = ssub.s32 %s13, %s20
      %p90 = scmp.eq.s32.totalorder %s89, 0
      %s92 = sadd.s32 %s91, 1
      %s93 = scalar_select %p90, %s91, %s92
      %p96 = pneg %p90
      %p97 = scmp.eq.s32.totalorder %s13, 1
      %p98 = por %p96, %p97
      %p99 = scmp.ne.s32.totalorder %s91, %s94
      %p100 = scmp.eq.s32.totalorder %s13, 0
      %p101 = por %p99, %p100
      %p102 = scmp.ne.s32.totalorder %s91, %s94
      %p103 = scmp.eq.s32.totalorder %s18, 1
      %p104 = por %p102, %p103
      %p105 = scmp.ne.s32.totalorder %s94, %s95
      %p106 = scmp.eq.s32.totalorder %s18, 0
      %p107 = por %p105, %p106
      %p108 = scmp.ne.s32.totalorder %s94, %s95
      %p109 = scmp.eq.s32.totalorder %s19, 1
      %p110 = por %p108, %p109
      %p112 = scmp.ne.s32.totalorder %s95, %s111
      %p113 = scmp.eq.s32.totalorder %s19, 0
      %p114 = por %p112, %p113
      %p115 = scmp.le.s32.totalorder 1, %s13
      %p116 = scmp.lt.s32.totalorder %s13, 3
      %p117 = pnand %p115, %p116
      %p118 = pneg %p117
      // Predicated region
      $region9: #{tpu_custom_call.1} parent=5 // pred_check
        _
      $region10: #{tpu_custom_call.1} parent=5 // pred_check_branch
        %120 = sbr.rel (%p117) target = $region12
      $region11: #{tpu_custom_call.1} parent=5 // pred_region
        %s121 = ssub.s32 %s13, 1
        // Predicated region
        $region13: #{tpu_custom_call.1} parent=11 // pred_check
          %p122 = pneg %p60
        $region14: #{tpu_custom_call.1} parent=11 // pred_check_branch
          %124 = sbr.rel (%p122) target = $region16
        $region15: #{tpu_custom_call.1} parent=11 // pred_region
          _
        $region16: #{tpu_custom_call.1} parent=11 // pred_fallthru
          _
        // Predicated region
        $region17: #{tpu_custom_call.1} parent=11 // pred_check
          %p125 = pneg %p81
        $region18: #{tpu_custom_call.1} parent=11 // pred_check_branch
          %127 = sbr.rel (%p125) target = $region20
        $region19: #{tpu_custom_call.1} parent=11 // pred_region
          %s129 = ssub.s32 768, 768
          %130 = vsyncadd [#allocation5], %s129
          %s131 = sshll.u32 [#allocation4], 4
          %s132 = int_to_ptr.vmem [resolvable:$true] %s131
          %137 = dma.hbm_to_vmem [thread:$0]  %s2, 768, %s132, [#allocation5], 128, 128, 8
        $region20: #{tpu_custom_call.1} parent=11 // pred_fallthru
          _
      $region12: #{tpu_custom_call.1} parent=5 // pred_fallthru
        _
      %p138 = scmp.lt.s32.totalorder %s13, 2
      // Predicated region
      $region21: #{tpu_custom_call.1} parent=5 // pred_check
        %p139 = pneg %p138
      $region22: #{tpu_custom_call.1} parent=5 // pred_check_branch
        %141 = sbr.rel (%p139) target = $region24
      $region23: #{tpu_custom_call.1} parent=5 // pred_region
        // Predicated region
        $region25: #{tpu_custom_call.1} parent=23 // pred_check
          %p142 = pneg %p33
        $region26: #{tpu_custom_call.1} parent=23 // pred_check_branch
          %144 = sbr.rel (%p142) target = $region28
        $region27: #{tpu_custom_call.1} parent=23 // pred_region
          %s145 = sand.u32 %s23, 1
          %s146 = scalar_lea.sflag [#allocation3], %s145
          %s147 = sand.u32 %s23, 1
          %s148 = smul.addr %s147, 16
          %s149 = scalar_lea.vmem [#allocation2], %s148
          %s151 = ssub.s32 256, 256
          %152 = vsyncadd %s146, %s151
          %s153 = smul.addr %s13, 2
          %s154 = smul.addr %s153, 128
          %s155 = scalar_lea.hbm %s0, %s154
          %s156 = sshll.u32 %s149, 4
          %s157 = int_to_ptr.vmem [resolvable:$true] %s156
          %162 = dma.hbm_to_vmem [thread:$0]  %s155, 256, %s157, %s146, 128, 128, 8
        $region28: #{tpu_custom_call.1} parent=23 // pred_fallthru
          _
      $region24: #{tpu_custom_call.1} parent=5 // pred_fallthru
        _
      %p163 = scmp.le.s32.totalorder 1, %s13
      %p164 = scmp.lt.s32.totalorder %s13, 3
      %p165 = pnand %p163, %p164
      %p166 = pneg %p165
      // Predicated region
      $region29: #{tpu_custom_call.1} parent=5 // pred_check
        _
      $region30: #{tpu_custom_call.1} parent=5 // pred_check_branch
        %168 = sbr.rel (%p165) target = $region32
      $region31: #{tpu_custom_call.1} parent=5 // pred_region
        %s169 = ssub.s32 %s13, 1
        %s170 = sand.u32 %s26, 1
        %s171 = scalar_lea.sflag [#allocation3], %s170
        %s172 = sand.u32 %s26, 1
        %s173 = smul.addr %s172, 16
        %s174 = scalar_lea.vmem [#allocation2], %s173
        // Predicated region
        $region33: #{tpu_custom_call.1} parent=31 // pred_check
          %p175 = pneg %p39
        $region34: #{tpu_custom_call.1} parent=31 // pred_check_branch
          %177 = sbr.rel (%p175) target = $region36
        $region35: #{tpu_custom_call.1} parent=31 // pred_region
          %178 = dma.done %s171, 256
        $region36: #{tpu_custom_call.1} parent=31 // pred_fallthru
          _
        // Predicated region
        $region37: #{tpu_custom_call.1} parent=31 // pred_check
          %p179 = pneg %p81
        $region38: #{tpu_custom_call.1} parent=31 // pred_check_branch
          %181 = sbr.rel (%p179) target = $region40
        $region39: #{tpu_custom_call.1} parent=31 // pred_region
          %182 = dma.done [#allocation5], 768
        $region40: #{tpu_custom_call.1} parent=31 // pred_fallthru
          _
        %s183 = sand.u32 %s26, 1
        %s184 = scalar_lea.sflag [#allocation3], %s183
        %s185 = sand.u32 %s26, 1
        %s186 = smul.addr %s185, 16
        %s187 = scalar_lea.vmem [#allocation2], %s186
        %p188 = pneg %p39
        %p189 = pneg %p36
        %p190 = pneg %p60
        %p191 = pneg %p57
        %p192 = pneg %p81
        %p193 = pneg %p78
        %p194 = pneg %p107
        %p195 = pneg %p104
        %p196 = scmp.lt.s32.totalorder %s18, 1
        %s197 = scalar_select %p196, %s18, 1
        %s198 = smul.addr %s197, 200
        %s199 = smul.addr %s198, 8
        %s200 = scalar_lea.vmem %s3, %s199
        %p201 = scmp.lt.s32.totalorder %s18, 1
        %s202 = scalar_select %p201, %s18, 1
        %s203 = smul.addr %s202, 200
        %s204 = smul.addr %s203, 8
        %s205 = scalar_lea.vmem %s3, %s204
        %v206 = vld [vmem:[%s174] sm:$0xff]
        %v207 = vld [vmem:[%s174 + $0x8] sm:$0xff]
        %v208 = vld [vmem:[#allocation4] sm:$0xff]
        %v209 = vld [vmem:[#allocation4 + $0x8] sm:$0xff]
        %v210 = vld [vmem:[#allocation4 + $0x10] sm:$0xff]
        %v211 = vld [vmem:[#allocation4 + $0x18] sm:$0xff]
        %v212 = vld [vmem:[#allocation4 + $0x20] sm:$0xff]
        %v213 = vld [vmem:[#allocation4 + $0x28] sm:$0xff]
        %vm214 = vcmask 392192
        %v216 = vsel %vm214, %v206, 0
        %v219 = vsel %vm214, %v207, 0
        %221 = vmatprep.subr.mxu0 0.0
        %222 = vmatpush1.msra.mxu0 %v208
        %223 = vmatprep.subr.mxu0 0.0
        %224 = vmatpush1.msra.mxu0 %v209
        %225 = vmatprep.subr.mxu0 0.0
        %226 = vmatpush1.msra.mxu0 %v210
        %227 = vmatprep.subr.mxu0 0.0
        %228 = vmatpush1.msra.mxu0 %v211
        %229 = vmatprep.subr.mxu0 0.0
        %230 = vmatpush1.msra.mxu0 %v212
        %231 = vmatprep.subr.mxu0 0.0
        %232 = vmatpush1.msra.mxu0 %v213
        %233 = vmatprep.subr.mxu0 0.0
        %234 = vmatpush1.msra.mxu0 0.0
        %235 = vmatprep.subr.mxu0 0.0
        %236 = vmatpush1.msra.mxu0 0.0
        %237 = vmatprep.subr.mxu0 0.0
        %238 = vmatpush1.msra.mxu0 0.0
        %239 = vmatprep.subr.mxu0 0.0
        %240 = vmatpush1.msra.mxu0 0.0
        %241 = vmatprep.subr.mxu0 0.0
        %242 = vmatpush1.msra.mxu0 0.0
        %243 = vmatprep.subr.mxu0 0.0
        %244 = vmatpush1.msra.mxu0 0.0
        %245 = vmatprep.subr.mxu0 0.0
        %246 = vmatpush1.msra.mxu0 0.0
        %247 = vmatprep.subr.mxu0 0.0
        %248 = vmatpush1.msra.mxu0 0.0
        %249 = vmatprep.subr.mxu0 0.0
        %250 = vmatpush1.msra.mxu0 0.0
        %251 = vmatprep.subr.mxu0 0.0
        %252 = vmatpush1.msra.mxu0 0.0
        %253 = vmatprep.subr.mxu0 0.0
        %254 = vmatpush1.msra.mxu0 0.0
        %255 = vmatprep.subr.mxu0 0.0
        %256 = vmatpush1.msra.mxu0 0.0
        %257 = vmatprep.subr.mxu0 0.0
        %258 = vmatpush1.msra.mxu0 0.0
        %259 = vmatprep.subr.mxu0 0.0
        %260 = vmatpush1.msra.mxu0 0.0
        %261 = vmatprep.subr.mxu0 0.0
        %262 = vmatpush1.msra.mxu0 0.0
        %263 = vmatprep.subr.mxu0 0.0
        %264 = vmatpush1.msra.mxu0 0.0
        %265 = vmatprep.subr.mxu0 0.0
        %266 = vmatpush1.msra.mxu0 0.0
        %267 = vmatprep.subr.mxu0 0.0
        %268 = vmatpush1.msra.mxu0 0.0
        %269 = vmatprep.subr.mxu0 0.0
        %270 = vmatpush1.msra.mxu0 0.0
        %271 = vmatprep.subr.mxu0 0.0
        %272 = vmatpush1.msra.mxu0 0.0
        %273 = vmatprep.subr.mxu0 0.0
        %274 = vmatpush1.msra.mxu0 0.0
        %275 = vmatprep.subr.mxu0 0.0
        %276 = vmatpush1.msra.mxu0 0.0
        %277 = vmatprep.subr.mxu0 0.0
        %278 = vmatpush1.msra.mxu0 0.0
        %279 = vmatprep.subr.mxu0 0.0
        %280 = vmatpush1.msra.mxu0 0.0
        %281 = vmatprep.subr.mxu0 0.0
        %282 = vmatpush1.msra.mxu0 0.0
        %283 = vmatprep.subr.mxu0 0.0
        %284 = vmatpush1.msra.mxu0 0.0
        %285 = vmatprep.mubr.f32.mxu0 0.0
        %286 = vmatmul.mubr.f32.gmra.mrb[0].mxu0 %v216
        %v287 = vpop.f32.mrb[0].mxu0
        %v288 = vadd.f32 0.0, %v287
        %v289 = vpop.f32.mrb[0].mxu0
        %290 = vmatprep.mubr.f32.mxu0 0.0
        %291 = vmatmul.mubr.f32.gmra.mrb[0].mxu0 %v219
        %v292 = vpop.f32.mrb[0].mxu0
        %v293 = vadd.f32 0.0, %v292
        %v294 = vpop.f32.mrb[0].mxu0
        %295 = vdwg.mxu0
        %v296 = vld [vmem:[%s1] sm:$0xff]
        %v297 = vld [vmem:[%s1 + $0x8] sm:$0xff]
        %v298 = vld [vmem:[%s1 + $0x10] sm:$0xff]
        %v299 = vld [vmem:[%s1 + $0x18] sm:$0xff]
        %vm300 = vcmask 130048
        %v302 = vsel %vm300, %v296, 0
        %v305 = vsel %vm300, %v297, 0
        %v308 = vsel %vm300, %v298, 0
        %v311 = vsel %vm300, %v299, 0
        %313 = vmatprep.subr.mxu0 0.0
        %314 = vmatpush1.msra.mxu0 %v288
        %315 = vmatprep.subr.mxu0 0.0
        %316 = vmatpush1.msra.mxu0 %v293
        %317 = vmatprep.subr.mxu0 0.0
        %318 = vmatpush1.msra.mxu0 0.0
        %319 = vmatprep.subr.mxu0 0.0
        %320 = vmatpush1.msra.mxu0 0.0
        %321 = vmatprep.subr.mxu0 0.0
        %322 = vmatpush1.msra.mxu0 0.0
        %323 = vmatprep.subr.mxu0 0.0
        %324 = vmatpush1.msra.mxu0 0.0
        %325 = vmatprep.subr.mxu0 0.0
        %326 = vmatpush1.msra.mxu0 0.0
        %327 = vmatprep.subr.mxu0 0.0
        %328 = vmatpush1.msra.mxu0 0.0
        %329 = vmatprep.subr.mxu0 0.0
        %330 = vmatpush1.msra.mxu0 0.0
        %331 = vmatprep.subr.mxu0 0.0
        %332 = vmatpush1.msra.mxu0 0.0
        %333 = vmatprep.subr.mxu0 0.0
        %334 = vmatpush1.msra.mxu0 0.0
        %335 = vmatprep.subr.mxu0 0.0
        %336 = vmatpush1.msra.mxu0 0.0
        %337 = vmatprep.subr.mxu0 0.0
        %338 = vmatpush1.msra.mxu0 0.0
        %339 = vmatprep.subr.mxu0 0.0
        %340 = vmatpush1.msra.mxu0 0.0
        %341 = vmatprep.subr.mxu0 0.0
        %342 = vmatpush1.msra.mxu0 0.0
        %343 = vmatprep.subr.mxu0 0.0
        %344 = vmatpush1.msra.mxu0 0.0
        %345 = vmatprep.subr.mxu0 0.0
        %346 = vmatpush1.msra.mxu0 0.0
        %347 = vmatprep.subr.mxu0 0.0
        %348 = vmatpush1.msra.mxu0 0.0
        %349 = vmatprep.subr.mxu0 0.0
        %350 = vmatpush1.msra.mxu0 0.0
        %351 = vmatprep.subr.mxu0 0.0
        %352 = vmatpush1.msra.mxu0 0.0
        %353 = vmatprep.subr.mxu0 0.0
        %354 = vmatpush1.msra.mxu0 0.0
        %355 = vmatprep.subr.mxu0 0.0
        %356 = vmatpush1.msra.mxu0 0.0
        %357 = vmatprep.subr.mxu0 0.0
        %358 = vmatpush1.msra.mxu0 0.0
        %359 = vmatprep.subr.mxu0 0.0
        %360 = vmatpush1.msra.mxu0 0.0
        %361 = vmatprep.subr.mxu0 0.0
        %362 = vmatpush1.msra.mxu0 0.0
        %363 = vmatprep.subr.mxu0 0.0
        %364 = vmatpush1.msra.mxu0 0.0
        %365 = vmatprep.subr.mxu0 0.0
        %366 = vmatpush1.msra.mxu0 0.0
        %367 = vmatprep.subr.mxu0 0.0
        %368 = vmatpush1.msra.mxu0 0.0
        %369 = vmatprep.subr.mxu0 0.0
        %370 = vmatpush1.msra.mxu0 0.0
        %371 = vmatprep.subr.mxu0 0.0
        %372 = vmatpush1.msra.mxu0 0.0
        %373 = vmatprep.subr.mxu0 0.0
        %374 = vmatpush1.msra.mxu0 0.0
        %375 = vmatprep.subr.mxu0 0.0
        %376 = vmatpush1.msra.mxu0 0.0
        %377 = vmatprep.mubr.f32.mxu0 0.0
        %378 = vmatmul.mubr.f32.gmra.mrb[0].mxu0 %v302
        %v379 = vpop.f32.mrb[0].mxu0
        %v380 = vadd.f32 0.0, %v379
        %v381 = vpop.f32.mrb[0].mxu0
        %382 = vmatprep.mubr.f32.mxu0 0.0
        %383 = vmatmul.mubr.f32.gmra.mrb[0].mxu0 %v305
        %v384 = vpop.f32.mrb[0].mxu0
        %v385 = vadd.f32 0.0, %v384
        %v386 = vpop.f32.mrb[0].mxu0
        %387 = vmatprep.mubr.f32.mxu0 0.0
        %388 = vmatmul.mubr.f32.gmra.mrb[0].mxu0 %v308
        %v389 = vpop.f32.mrb[0].mxu0
        %v390 = vadd.f32 0.0, %v389
        %v391 = vpop.f32.mrb[0].mxu0
        %392 = vmatprep.mubr.f32.mxu0 0.0
        %393 = vmatmul.mubr.f32.gmra.mrb[0].mxu0 %v311
        %v394 = vpop.f32.mrb[0].mxu0
        %v395 = vadd.f32 0.0, %v394
        %v396 = vpop.f32.mrb[0].mxu0
        %397 = vdwg.mxu0
        %vm398 = vcmask 31744
        %399 = vst.msk [vmem:[%s205] sm:$0xff] %vm398, 0.0
        %400 = vst.msk [vmem:[%s205 + $0x8] sm:$0xff] %vm398, 0.0
        %401 = vst.msk [vmem:[%s205 + $0x10] sm:$0xff] %vm398, 0.0
        %402 = vst.msk [vmem:[%s205 + $0x18] sm:$0xff] %vm398, 0.0
        %403 = vst.msk [vmem:[%s205 + $0x20] sm:$0xff] %vm398, 0.0
        %404 = vst.msk [vmem:[%s205 + $0x28] sm:$0xff] %vm398, 0.0
        %405 = vst.msk [vmem:[%s205 + $0x30] sm:$0xff] %vm398, 0.0
        %406 = vst.msk [vmem:[%s205 + $0x38] sm:$0xff] %vm398, 0.0
        %407 = vst.msk [vmem:[%s205 + $0x40] sm:$0xff] %vm398, 0.0
        %408 = vst.msk [vmem:[%s205 + $0x48] sm:$0xff] %vm398, 0.0
        %409 = vst.msk [vmem:[%s205 + $0x50] sm:$0xff] %vm398, 0.0
        %410 = vst.msk [vmem:[%s205 + $0x58] sm:$0xff] %vm398, 0.0
        %411 = vst.msk [vmem:[%s205 + $0x60] sm:$0xff] %vm398, 0.0
        %412 = vst.msk [vmem:[%s205 + $0x68] sm:$0xff] %vm398, 0.0
        %413 = vst.msk [vmem:[%s205 + $0x70] sm:$0xff] %vm398, 0.0
        %414 = vst.msk [vmem:[%s205 + $0x78] sm:$0xff] %vm398, 0.0
        %415 = vst.msk [vmem:[%s205 + $0x80] sm:$0xff] %vm398, 0.0
        %416 = vst.msk [vmem:[%s205 + $0x88] sm:$0xff] %vm398, 0.0
        %417 = vst.msk [vmem:[%s205 + $0x90] sm:$0xff] %vm398, 0.0
        %418 = vst.msk [vmem:[%s205 + $0x98] sm:$0xff] %vm398, 0.0
        %419 = vst.msk [vmem:[%s205 + $0xa0] sm:$0xff] %vm398, 0.0
        %420 = vst.msk [vmem:[%s205 + $0xa8] sm:$0xff] %vm398, 0.0
        %421 = vst.msk [vmem:[%s205 + $0xb0] sm:$0xff] %vm398, 0.0
        %422 = vst.msk [vmem:[%s205 + $0xb8] sm:$0xff] %vm398, 0.0
        %423 = vst.msk [vmem:[%s205 + $0xc0] sm:$0xff] %vm398, 0.0
        %424 = vst.msk [vmem:[%s205 + $0xc8] sm:$0xff] %vm398, 0.0
        %425 = vst.msk [vmem:[%s205 + $0xd0] sm:$0xff] %vm398, 0.0
        %426 = vst.msk [vmem:[%s205 + $0xd8] sm:$0xff] %vm398, 0.0
        %427 = vst.msk [vmem:[%s205 + $0xe0] sm:$0xff] %vm398, 0.0
        %428 = vst.msk [vmem:[%s205 + $0xe8] sm:$0xff] %vm398, 0.0
        %429 = vst.msk [vmem:[%s205 + $0xf0] sm:$0xff] %vm398, 0.0
        %430 = vst.msk [vmem:[%s205 + $0xf8] sm:$0xff] %vm398, 0.0
        %431 = vst.msk [vmem:[%s205 + $0x100] sm:$0xff] %vm398, 0.0
        %432 = vst.msk [vmem:[%s205 + $0x108] sm:$0xff] %vm398, 0.0
        %433 = vst.msk [vmem:[%s205 + $0x110] sm:$0xff] %vm398, 0.0
        %434 = vst.msk [vmem:[%s205 + $0x118] sm:$0xff] %vm398, 0.0
        %435 = vst.msk [vmem:[%s205 + $0x120] sm:$0xff] %vm398, 0.0
        %436 = vst.msk [vmem:[%s205 + $0x128] sm:$0xff] %vm398, 0.0
        %437 = vst.msk [vmem:[%s205 + $0x130] sm:$0xff] %vm398, 0.0
        %438 = vst.msk [vmem:[%s205 + $0x138] sm:$0xff] %vm398, 0.0
        %439 = vst.msk [vmem:[%s205 + $0x140] sm:$0xff] %vm398, 0.0
        %440 = vst.msk [vmem:[%s205 + $0x148] sm:$0xff] %vm398, 0.0
        %441 = vst.msk [vmem:[%s205 + $0x150] sm:$0xff] %vm398, 0.0
        %442 = vst.msk [vmem:[%s205 + $0x158] sm:$0xff] %vm398, 0.0
        %443 = vst.msk [vmem:[%s205 + $0x160] sm:$0xff] %vm398, 0.0
        %444 = vst.msk [vmem:[%s205 + $0x168] sm:$0xff] %vm398, 0.0
        %445 = vst.msk [vmem:[%s205 + $0x170] sm:$0xff] %vm398, 0.0
        %446 = vst.msk [vmem:[%s205 + $0x178] sm:$0xff] %vm398, 0.0
        %447 = vst.msk [vmem:[%s205 + $0x180] sm:$0xff] %vm398, 0.0
        %448 = vst.msk [vmem:[%s205 + $0x188] sm:$0xff] %vm398, 0.0
        %449 = vst.msk [vmem:[%s205 + $0x190] sm:$0xff] %vm398, 0.0
        %450 = vst.msk [vmem:[%s205 + $0x198] sm:$0xff] %vm398, 0.0
        %451 = vst.msk [vmem:[%s205 + $0x1a0] sm:$0xff] %vm398, 0.0
        %452 = vst.msk [vmem:[%s205 + $0x1a8] sm:$0xff] %vm398, 0.0
        %453 = vst.msk [vmem:[%s205 + $0x1b0] sm:$0xff] %vm398, 0.0
        %454 = vst.msk [vmem:[%s205 + $0x1b8] sm:$0xff] %vm398, 0.0
        %455 = vst.msk [vmem:[%s205 + $0x1c0] sm:$0xff] %vm398, 0.0
        %456 = vst.msk [vmem:[%s205 + $0x1c8] sm:$0xff] %vm398, 0.0
        %457 = vst.msk [vmem:[%s205 + $0x1d0] sm:$0xff] %vm398, 0.0
        %458 = vst.msk [vmem:[%s205 + $0x1d8] sm:$0xff] %vm398, 0.0
        %459 = vst.msk [vmem:[%s205 + $0x1e0] sm:$0xff] %vm398, 0.0
        %460 = vst.msk [vmem:[%s205 + $0x1e8] sm:$0xff] %vm398, 0.0
        %461 = vst.msk [vmem:[%s205 + $0x1f0] sm:$0xff] %vm398, 0.0
        %462 = vst.msk [vmem:[%s205 + $0x1f8] sm:$0xff] %vm398, 0.0
        %463 = vst.msk [vmem:[%s205 + $0x200] sm:$0xff] %vm398, 0.0
        %464 = vst.msk [vmem:[%s205 + $0x208] sm:$0xff] %vm398, 0.0
        %465 = vst.msk [vmem:[%s205 + $0x210] sm:$0xff] %vm398, 0.0
        %466 = vst.msk [vmem:[%s205 + $0x218] sm:$0xff] %vm398, 0.0
        %467 = vst.msk [vmem:[%s205 + $0x220] sm:$0xff] %vm398, 0.0
        %468 = vst.msk [vmem:[%s205 + $0x228] sm:$0xff] %vm398, 0.0
        %469 = vst.msk [vmem:[%s205 + $0x230] sm:$0xff] %vm398, 0.0
        %470 = vst.msk [vmem:[%s205 + $0x238] sm:$0xff] %vm398, 0.0
        %471 = vst.msk [vmem:[%s205 + $0x240] sm:$0xff] %vm398, 0.0
        %472 = vst.msk [vmem:[%s205 + $0x248] sm:$0xff] %vm398, 0.0
        %473 = vst.msk [vmem:[%s205 + $0x250] sm:$0xff] %vm398, 0.0
        %474 = vst.msk [vmem:[%s205 + $0x258] sm:$0xff] %vm398, 0.0
        %475 = vst.msk [vmem:[%s205 + $0x260] sm:$0xff] %vm398, 0.0
        %476 = vst.msk [vmem:[%s205 + $0x268] sm:$0xff] %vm398, 0.0
        %477 = vst.msk [vmem:[%s205 + $0x270] sm:$0xff] %vm398, 0.0
        %478 = vst.msk [vmem:[%s205 + $0x278] sm:$0xff] %vm398, 0.0
        %479 = vst.msk [vmem:[%s205 + $0x280] sm:$0xff] %vm398, 0.0
        %480 = vst.msk [vmem:[%s205 + $0x288] sm:$0xff] %vm398, 0.0
        %481 = vst.msk [vmem:[%s205 + $0x290] sm:$0xff] %vm398, 0.0
        %482 = vst.msk [vmem:[%s205 + $0x298] sm:$0xff] %vm398, 0.0
        %483 = vst.msk [vmem:[%s205 + $0x2a0] sm:$0xff] %vm398, 0.0
        %484 = vst.msk [vmem:[%s205 + $0x2a8] sm:$0xff] %vm398, 0.0
        %485 = vst.msk [vmem:[%s205 + $0x2b0] sm:$0xff] %vm398, 0.0
        %486 = vst.msk [vmem:[%s205 + $0x2b8] sm:$0xff] %vm398, 0.0
        %487 = vst.msk [vmem:[%s205 + $0x2c0] sm:$0xff] %vm398, 0.0
        %488 = vst.msk [vmem:[%s205 + $0x2c8] sm:$0xff] %vm398, 0.0
        %489 = vst.msk [vmem:[%s205 + $0x2d0] sm:$0xff] %vm398, 0.0
        %490 = vst.msk [vmem:[%s205 + $0x2d8] sm:$0xff] %vm398, 0.0
        %491 = vst.msk [vmem:[%s205 + $0x2e0] sm:$0xff] %vm398, 0.0
        %492 = vst.msk [vmem:[%s205 + $0x2e8] sm:$0xff] %vm398, 0.0
        %493 = vst.msk [vmem:[%s205 + $0x2f0] sm:$0xff] %vm398, 0.0
        %494 = vst.msk [vmem:[%s205 + $0x2f8] sm:$0xff] %vm398, 0.0
        %495 = vst.msk [vmem:[%s205 + $0x300] sm:$0xff] %vm398, 0.0
        %496 = vst.msk [vmem:[%s205 + $0x308] sm:$0xff] %vm398, 0.0
        %497 = vst.msk [vmem:[%s205 + $0x310] sm:$0xff] %vm398, 0.0
        %498 = vst.msk [vmem:[%s205 + $0x318] sm:$0xff] %vm398, 0.0
        %499 = vst.msk [vmem:[%s205 + $0x320] sm:$0xff] %vm398, 0.0
        %500 = vst.msk [vmem:[%s205 + $0x328] sm:$0xff] %vm398, 0.0
        %501 = vst.msk [vmem:[%s205 + $0x330] sm:$0xff] %vm398, 0.0
        %502 = vst.msk [vmem:[%s205 + $0x338] sm:$0xff] %vm398, 0.0
        %503 = vst.msk [vmem:[%s205 + $0x340] sm:$0xff] %vm398, 0.0
        %504 = vst.msk [vmem:[%s205 + $0x348] sm:$0xff] %vm398, 0.0
        %505 = vst.msk [vmem:[%s205 + $0x350] sm:$0xff] %vm398, 0.0
        %506 = vst.msk [vmem:[%s205 + $0x358] sm:$0xff] %vm398, 0.0
        %507 = vst.msk [vmem:[%s205 + $0x360] sm:$0xff] %vm398, 0.0
        %508 = vst.msk [vmem:[%s205 + $0x368] sm:$0xff] %vm398, 0.0
        %509 = vst.msk [vmem:[%s205 + $0x370] sm:$0xff] %vm398, 0.0
        %510 = vst.msk [vmem:[%s205 + $0x378] sm:$0xff] %vm398, 0.0
        %511 = vst.msk [vmem:[%s205 + $0x380] sm:$0xff] %vm398, 0.0
        %512 = vst.msk [vmem:[%s205 + $0x388] sm:$0xff] %vm398, 0.0
        %513 = vst.msk [vmem:[%s205 + $0x390] sm:$0xff] %vm398, 0.0
        %514 = vst.msk [vmem:[%s205 + $0x398] sm:$0xff] %vm398, 0.0
        %515 = vst.msk [vmem:[%s205 + $0x3a0] sm:$0xff] %vm398, 0.0
        %516 = vst.msk [vmem:[%s205 + $0x3a8] sm:$0xff] %vm398, 0.0
        %517 = vst.msk [vmem:[%s205 + $0x3b0] sm:$0xff] %vm398, 0.0
        %518 = vst.msk [vmem:[%s205 + $0x3b8] sm:$0xff] %vm398, 0.0
        %519 = vst.msk [vmem:[%s205 + $0x3c0] sm:$0xff] %vm398, 0.0
        %520 = vst.msk [vmem:[%s205 + $0x3c8] sm:$0xff] %vm398, 0.0
        %521 = vst.msk [vmem:[%s205 + $0x3d0] sm:$0xff] %vm398, 0.0
        %522 = vst.msk [vmem:[%s205 + $0x3d8] sm:$0xff] %vm398, 0.0
        %523 = vst.msk [vmem:[%s205 + $0x3e0] sm:$0xff] %vm398, 0.0
        %524 = vst.msk [vmem:[%s205 + $0x3e8] sm:$0xff] %vm398, 0.0
        %525 = vst.msk [vmem:[%s205 + $0x3f0] sm:$0xff] %vm398, 0.0
        %526 = vst.msk [vmem:[%s205 + $0x3f8] sm:$0xff] %vm398, 0.0
        %527 = vst.msk [vmem:[%s205 + $0x400] sm:$0xff] %vm398, 0.0
        %528 = vst.msk [vmem:[%s205 + $0x408] sm:$0xff] %vm398, 0.0
        %529 = vst.msk [vmem:[%s205 + $0x410] sm:$0xff] %vm398, 0.0
        %530 = vst.msk [vmem:[%s205 + $0x418] sm:$0xff] %vm398, 0.0
        %531 = vst.msk [vmem:[%s205 + $0x420] sm:$0xff] %vm398, 0.0
        %532 = vst.msk [vmem:[%s205 + $0x428] sm:$0xff] %vm398, 0.0
        %533 = vst.msk [vmem:[%s205 + $0x430] sm:$0xff] %vm398, 0.0
        %534 = vst.msk [vmem:[%s205 + $0x438] sm:$0xff] %vm398, 0.0
        %535 = vst.msk [vmem:[%s205 + $0x440] sm:$0xff] %vm398, 0.0
        %536 = vst.msk [vmem:[%s205 + $0x448] sm:$0xff] %vm398, 0.0
        %537 = vst.msk [vmem:[%s205 + $0x450] sm:$0xff] %vm398, 0.0
        %538 = vst.msk [vmem:[%s205 + $0x458] sm:$0xff] %vm398, 0.0
        %539 = vst.msk [vmem:[%s205 + $0x460] sm:$0xff] %vm398, 0.0
        %540 = vst.msk [vmem:[%s205 + $0x468] sm:$0xff] %vm398, 0.0
        %541 = vst.msk [vmem:[%s205 + $0x470] sm:$0xff] %vm398, 0.0
        %542 = vst.msk [vmem:[%s205 + $0x478] sm:$0xff] %vm398, 0.0
        %543 = vst.msk [vmem:[%s205 + $0x480] sm:$0xff] %vm398, 0.0
        %544 = vst.msk [vmem:[%s205 + $0x488] sm:$0xff] %vm398, 0.0
        %545 = vst.msk [vmem:[%s205 + $0x490] sm:$0xff] %vm398, 0.0
        %546 = vst.msk [vmem:[%s205 + $0x498] sm:$0xff] %vm398, 0.0
        %547 = vst.msk [vmem:[%s205 + $0x4a0] sm:$0xff] %vm398, 0.0
        %548 = vst.msk [vmem:[%s205 + $0x4a8] sm:$0xff] %vm398, 0.0
        %549 = vst.msk [vmem:[%s205 + $0x4b0] sm:$0xff] %vm398, 0.0
        %550 = vst.msk [vmem:[%s205 + $0x4b8] sm:$0xff] %vm398, 0.0
        %551 = vst.msk [vmem:[%s205 + $0x4c0] sm:$0xff] %vm398, 0.0
        %552 = vst.msk [vmem:[%s205 + $0x4c8] sm:$0xff] %vm398, 0.0
        %553 = vst.msk [vmem:[%s205 + $0x4d0] sm:$0xff] %vm398, 0.0
        %554 = vst.msk [vmem:[%s205 + $0x4d8] sm:$0xff] %vm398, 0.0
        %555 = vst.msk [vmem:[%s205 + $0x4e0] sm:$0xff] %vm398, 0.0
        %556 = vst.msk [vmem:[%s205 + $0x4e8] sm:$0xff] %vm398, 0.0
        %557 = vst.msk [vmem:[%s205 + $0x4f0] sm:$0xff] %vm398, 0.0
        %558 = vst.msk [vmem:[%s205 + $0x4f8] sm:$0xff] %vm398, 0.0
        %559 = vst.msk [vmem:[%s205 + $0x500] sm:$0xff] %vm398, 0.0
        %560 = vst.msk [vmem:[%s205 + $0x508] sm:$0xff] %vm398, 0.0
        %561 = vst.msk [vmem:[%s205 + $0x510] sm:$0xff] %vm398, 0.0
        %562 = vst.msk [vmem:[%s205 + $0x518] sm:$0xff] %vm398, 0.0
        %563 = vst.msk [vmem:[%s205 + $0x520] sm:$0xff] %vm398, 0.0
        %564 = vst.msk [vmem:[%s205 + $0x528] sm:$0xff] %vm398, 0.0
        %565 = vst.msk [vmem:[%s205 + $0x530] sm:$0xff] %vm398, 0.0
        %566 = vst.msk [vmem:[%s205 + $0x538] sm:$0xff] %vm398, 0.0
        %567 = vst.msk [vmem:[%s205 + $0x540] sm:$0xff] %vm398, 0.0
        %568 = vst.msk [vmem:[%s205 + $0x548] sm:$0xff] %vm398, 0.0
        %569 = vst.msk [vmem:[%s205 + $0x550] sm:$0xff] %vm398, 0.0
        %570 = vst.msk [vmem:[%s205 + $0x558] sm:$0xff] %vm398, 0.0
        %571 = vst.msk [vmem:[%s205 + $0x560] sm:$0xff] %vm398, 0.0
        %572 = vst.msk [vmem:[%s205 + $0x568] sm:$0xff] %vm398, 0.0
        %573 = vst.msk [vmem:[%s205 + $0x570] sm:$0xff] %vm398, 0.0
        %574 = vst.msk [vmem:[%s205 + $0x578] sm:$0xff] %vm398, 0.0
        %575 = vst.msk [vmem:[%s205 + $0x580] sm:$0xff] %vm398, 0.0
        %576 = vst.msk [vmem:[%s205 + $0x588] sm:$0xff] %vm398, 0.0
        %577 = vst.msk [vmem:[%s205 + $0x590] sm:$0xff] %vm398, 0.0
        %578 = vst.msk [vmem:[%s205 + $0x598] sm:$0xff] %vm398, 0.0
        %579 = vst.msk [vmem:[%s205 + $0x5a0] sm:$0xff] %vm398, 0.0
        %580 = vst.msk [vmem:[%s205 + $0x5a8] sm:$0xff] %vm398, 0.0
        %581 = vst.msk [vmem:[%s205 + $0x5b0] sm:$0xff] %vm398, 0.0
        %582 = vst.msk [vmem:[%s205 + $0x5b8] sm:$0xff] %vm398, 0.0
        %583 = vst.msk [vmem:[%s205 + $0x5c0] sm:$0xff] %vm398, 0.0
        %584 = vst.msk [vmem:[%s205 + $0x5c8] sm:$0xff] %vm398, 0.0
        %585 = vst.msk [vmem:[%s205 + $0x5d0] sm:$0xff] %vm398, 0.0
        %586 = vst.msk [vmem:[%s205 + $0x5d8] sm:$0xff] %vm398, 0.0
        %587 = vst.msk [vmem:[%s205 + $0x5e0] sm:$0xff] %vm398, 0.0
        %588 = vst.msk [vmem:[%s205 + $0x5e8] sm:$0xff] %vm398, 0.0
        %589 = vst.msk [vmem:[%s205 + $0x5f0] sm:$0xff] %vm398, 0.0
        %590 = vst.msk [vmem:[%s205 + $0x5f8] sm:$0xff] %vm398, 0.0
        %591 = vst.msk [vmem:[%s205 + $0x600] sm:$0xff] %vm398, 0.0
        %592 = vst.msk [vmem:[%s205 + $0x608] sm:$0xff] %vm398, 0.0
        %593 = vst.msk [vmem:[%s205 + $0x610] sm:$0xff] %vm398, 0.0
        %594 = vst.msk [vmem:[%s205 + $0x618] sm:$0xff] %vm398, 0.0
        %595 = vst.msk [vmem:[%s205 + $0x620] sm:$0xff] %vm398, 0.0
        %596 = vst.msk [vmem:[%s205 + $0x628] sm:$0xff] %vm398, 0.0
        %597 = vst.msk [vmem:[%s205 + $0x630] sm:$0xff] %vm398, 0.0
        %598 = vst.msk [vmem:[%s205 + $0x638] sm:$0xff] %vm398, 0.0
        %603 = vrot.lane.b32.xlu0 %v380, 124
        %v604 = vpop.permute.xlu0 %603
        %605 = vrot.lane.b32.xlu0 %v385, 124
        %v606 = vpop.permute.xlu0 %605
        %607 = vrot.lane.b32.xlu0 %v390, 124
        %v608 = vpop.permute.xlu0 %607
        %609 = vrot.lane.b32.xlu0 %v395, 124
        %v610 = vpop.permute.xlu0 %609
        %615 = vrot.lane.b32.xlu0 %v380, 120
        %v616 = vpop.permute.xlu0 %615
        %617 = vrot.lane.b32.xlu0 %v385, 120
        %v618 = vpop.permute.xlu0 %617
        %619 = vrot.lane.b32.xlu0 %v390, 120
        %v620 = vpop.permute.xlu0 %619
        %621 = vrot.lane.b32.xlu0 %v395, 120
        %v622 = vpop.permute.xlu0 %621
        %627 = vrot.lane.b32.xlu0 %v380, 116
        %v628 = vpop.permute.xlu0 %627
        %629 = vrot.lane.b32.xlu0 %v385, 116
        %v630 = vpop.permute.xlu0 %629
        %631 = vrot.lane.b32.xlu0 %v390, 116
        %v632 = vpop.permute.xlu0 %631
        %633 = vrot.lane.b32.xlu0 %v395, 116
        %v634 = vpop.permute.xlu0 %633
        %639 = vrot.lane.b32.xlu0 %v380, 112
        %v640 = vpop.permute.xlu0 %639
        %641 = vrot.lane.b32.xlu0 %v385, 112
        %v642 = vpop.permute.xlu0 %641
        %643 = vrot.lane.b32.xlu0 %v390, 112
        %v644 = vpop.permute.xlu0 %643
        %645 = vrot.lane.b32.xlu0 %v395, 112
        %v646 = vpop.permute.xlu0 %645
        %651 = vrot.lane.b32.xlu0 %v380, 108
        %v652 = vpop.permute.xlu0 %651
        %653 = vrot.lane.b32.xlu0 %v385, 108
        %v654 = vpop.permute.xlu0 %653
        %655 = vrot.lane.b32.xlu0 %v390, 108
        %v656 = vpop.permute.xlu0 %655
        %657 = vrot.lane.b32.xlu0 %v395, 108
        %v658 = vpop.permute.xlu0 %657
        %663 = vrot.lane.b32.xlu0 %v380, 104
        %v664 = vpop.permute.xlu0 %663
        %665 = vrot.lane.b32.xlu0 %v385, 104
        %v666 = vpop.permute.xlu0 %665
        %667 = vrot.lane.b32.xlu0 %v390, 104
        %v668 = vpop.permute.xlu0 %667
        %669 = vrot.lane.b32.xlu0 %v395, 104
        %v670 = vpop.permute.xlu0 %669
        %675 = vrot.lane.b32.xlu0 %v380, 100
        %v676 = vpop.permute.xlu0 %675
        %677 = vrot.lane.b32.xlu0 %v385, 100
        %v678 = vpop.permute.xlu0 %677
        %679 = vrot.lane.b32.xlu0 %v390, 100
        %v680 = vpop.permute.xlu0 %679
        %681 = vrot.lane.b32.xlu0 %v395, 100
        %v682 = vpop.permute.xlu0 %681
        %687 = vrot.lane.b32.xlu0 %v380, 96
        %v688 = vpop.permute.xlu0 %687
        %689 = vrot.lane.b32.xlu0 %v385, 96
        %v690 = vpop.permute.xlu0 %689
        %691 = vrot.lane.b32.xlu0 %v390, 96
        %v692 = vpop.permute.xlu0 %691
        %693 = vrot.lane.b32.xlu0 %v395, 96
        %v694 = vpop.permute.xlu0 %693
        %699 = vrot.lane.b32.xlu0 %v380, 92
        %v700 = vpop.permute.xlu0 %699
        %701 = vrot.lane.b32.xlu0 %v385, 92
        %v702 = vpop.permute.xlu0 %701
        %703 = vrot.lane.b32.xlu0 %v390, 92
        %v704 = vpop.permute.xlu0 %703
        %705 = vrot.lane.b32.xlu0 %v395, 92
        %v706 = vpop.permute.xlu0 %705
        %711 = vrot.lane.b32.xlu0 %v380, 88
        %v712 = vpop.permute.xlu0 %711
        %713 = vrot.lane.b32.xlu0 %v385, 88
        %v714 = vpop.permute.xlu0 %713
        %715 = vrot.lane.b32.xlu0 %v390, 88
        %v716 = vpop.permute.xlu0 %715
        %717 = vrot.lane.b32.xlu0 %v395, 88
        %v718 = vpop.permute.xlu0 %717
        %723 = vrot.lane.b32.xlu0 %v380, 84
        %v724 = vpop.permute.xlu0 %723
        %725 = vrot.lane.b32.xlu0 %v385, 84
        %v726 = vpop.permute.xlu0 %725
        %727 = vrot.lane.b32.xlu0 %v390, 84
        %v728 = vpop.permute.xlu0 %727
        %729 = vrot.lane.b32.xlu0 %v395, 84
        %v730 = vpop.permute.xlu0 %729
        %735 = vrot.lane.b32.xlu0 %v380, 80
        %v736 = vpop.permute.xlu0 %735
        %737 = vrot.lane.b32.xlu0 %v385, 80
        %v738 = vpop.permute.xlu0 %737
        %739 = vrot.lane.b32.xlu0 %v390, 80
        %v740 = vpop.permute.xlu0 %739
        %741 = vrot.lane.b32.xlu0 %v395, 80
        %v742 = vpop.permute.xlu0 %741
        %747 = vrot.lane.b32.xlu0 %v380, 76
        %v748 = vpop.permute.xlu0 %747
        %749 = vrot.lane.b32.xlu0 %v385, 76
        %v750 = vpop.permute.xlu0 %749
        %751 = vrot.lane.b32.xlu0 %v390, 76
        %v752 = vpop.permute.xlu0 %751
        %753 = vrot.lane.b32.xlu0 %v395, 76
        %v754 = vpop.permute.xlu0 %753
        %759 = vrot.lane.b32.xlu0 %v380, 72
        %v760 = vpop.permute.xlu0 %759
        %761 = vrot.lane.b32.xlu0 %v385, 72
        %v762 = vpop.permute.xlu0 %761
        %763 = vrot.lane.b32.xlu0 %v390, 72
        %v764 = vpop.permute.xlu0 %763
        %765 = vrot.lane.b32.xlu0 %v395, 72
        %v766 = vpop.permute.xlu0 %765
        %771 = vrot.lane.b32.xlu0 %v380, 68
        %v772 = vpop.permute.xlu0 %771
        %773 = vrot.lane.b32.xlu0 %v385, 68
        %v774 = vpop.permute.xlu0 %773
        %775 = vrot.lane.b32.xlu0 %v390, 68
        %v776 = vpop.permute.xlu0 %775
        %777 = vrot.lane.b32.xlu0 %v395, 68
        %v778 = vpop.permute.xlu0 %777
        %783 = vrot.lane.b32.xlu0 %v380, 64
        %v784 = vpop.permute.xlu0 %783
        %785 = vrot.lane.b32.xlu0 %v385, 64
        %v786 = vpop.permute.xlu0 %785
        %787 = vrot.lane.b32.xlu0 %v390, 64
        %v788 = vpop.permute.xlu0 %787
        %789 = vrot.lane.b32.xlu0 %v395, 64
        %v790 = vpop.permute.xlu0 %789
        %795 = vrot.lane.b32.xlu0 %v380, 60
        %v796 = vpop.permute.xlu0 %795
        %797 = vrot.lane.b32.xlu0 %v385, 60
        %v798 = vpop.permute.xlu0 %797
        %799 = vrot.lane.b32.xlu0 %v390, 60
        %v800 = vpop.permute.xlu0 %799
        %801 = vrot.lane.b32.xlu0 %v395, 60
        %v802 = vpop.permute.xlu0 %801
        %807 = vrot.lane.b32.xlu0 %v380, 56
        %v808 = vpop.permute.xlu0 %807
        %809 = vrot.lane.b32.xlu0 %v385, 56
        %v810 = vpop.permute.xlu0 %809
        %811 = vrot.lane.b32.xlu0 %v390, 56
        %v812 = vpop.permute.xlu0 %811
        %813 = vrot.lane.b32.xlu0 %v395, 56
        %v814 = vpop.permute.xlu0 %813
        %819 = vrot.lane.b32.xlu0 %v380, 52
        %v820 = vpop.permute.xlu0 %819
        %821 = vrot.lane.b32.xlu0 %v385, 52
        %v822 = vpop.permute.xlu0 %821
        %823 = vrot.lane.b32.xlu0 %v390, 52
        %v824 = vpop.permute.xlu0 %823
        %825 = vrot.lane.b32.xlu0 %v395, 52
        %v826 = vpop.permute.xlu0 %825
        %831 = vrot.lane.b32.xlu0 %v380, 48
        %v832 = vpop.permute.xlu0 %831
        %833 = vrot.lane.b32.xlu0 %v385, 48
        %v834 = vpop.permute.xlu0 %833
        %835 = vrot.lane.b32.xlu0 %v390, 48
        %v836 = vpop.permute.xlu0 %835
        %837 = vrot.lane.b32.xlu0 %v395, 48
        %v838 = vpop.permute.xlu0 %837
        %843 = vrot.lane.b32.xlu0 %v380, 44
        %v844 = vpop.permute.xlu0 %843
        %845 = vrot.lane.b32.xlu0 %v385, 44
        %v846 = vpop.permute.xlu0 %845
        %847 = vrot.lane.b32.xlu0 %v390, 44
        %v848 = vpop.permute.xlu0 %847
        %849 = vrot.lane.b32.xlu0 %v395, 44
        %v850 = vpop.permute.xlu0 %849
        %855 = vrot.lane.b32.xlu0 %v380, 40
        %v856 = vpop.permute.xlu0 %855
        %857 = vrot.lane.b32.xlu0 %v385, 40
        %v858 = vpop.permute.xlu0 %857
        %859 = vrot.lane.b32.xlu0 %v390, 40
        %v860 = vpop.permute.xlu0 %859
        %861 = vrot.lane.b32.xlu0 %v395, 40
        %v862 = vpop.permute.xlu0 %861
        %867 = vrot.lane.b32.xlu0 %v380, 36
        %v868 = vpop.permute.xlu0 %867
        %869 = vrot.lane.b32.xlu0 %v385, 36
        %v870 = vpop.permute.xlu0 %869
        %871 = vrot.lane.b32.xlu0 %v390, 36
        %v872 = vpop.permute.xlu0 %871
        %873 = vrot.lane.b32.xlu0 %v395, 36
        %v874 = vpop.permute.xlu0 %873
        %879 = vrot.lane.b32.xlu0 %v380, 32
        %v880 = vpop.permute.xlu0 %879
        %881 = vrot.lane.b32.xlu0 %v385, 32
        %v882 = vpop.permute.xlu0 %881
        %883 = vrot.lane.b32.xlu0 %v390, 32
        %v884 = vpop.permute.xlu0 %883
        %885 = vrot.lane.b32.xlu0 %v395, 32
        %v886 = vpop.permute.xlu0 %885
        %891 = vrot.lane.b32.xlu0 %v380, 28
        %v892 = vpop.permute.xlu0 %891
        %893 = vrot.lane.b32.xlu0 %v385, 28
        %v894 = vpop.permute.xlu0 %893
        %895 = vrot.lane.b32.xlu0 %v390, 28
        %v896 = vpop.permute.xlu0 %895
        %897 = vrot.lane.b32.xlu0 %v395, 28
        %v898 = vpop.permute.xlu0 %897
        %903 = vrot.lane.b32.xlu0 %v380, 24
        %v904 = vpop.permute.xlu0 %903
        %905 = vrot.lane.b32.xlu0 %v385, 24
        %v906 = vpop.permute.xlu0 %905
        %907 = vrot.lane.b32.xlu0 %v390, 24
        %v908 = vpop.permute.xlu0 %907
        %909 = vrot.lane.b32.xlu0 %v395, 24
        %v910 = vpop.permute.xlu0 %909
        %915 = vrot.lane.b32.xlu0 %v380, 20
        %v916 = vpop.permute.xlu0 %915
        %917 = vrot.lane.b32.xlu0 %v385, 20
        %v918 = vpop.permute.xlu0 %917
        %919 = vrot.lane.b32.xlu0 %v390, 20
        %v920 = vpop.permute.xlu0 %919
        %921 = vrot.lane.b32.xlu0 %v395, 20
        %v922 = vpop.permute.xlu0 %921
        %927 = vrot.lane.b32.xlu0 %v380, 16
        %v928 = vpop.permute.xlu0 %927
        %929 = vrot.lane.b32.xlu0 %v385, 16
        %v930 = vpop.permute.xlu0 %929
        %931 = vrot.lane.b32.xlu0 %v390, 16
        %v932 = vpop.permute.xlu0 %931
        %933 = vrot.lane.b32.xlu0 %v395, 16
        %v934 = vpop.permute.xlu0 %933
        %939 = vrot.lane.b32.xlu0 %v380, 12
        %v940 = vpop.permute.xlu0 %939
        %941 = vrot.lane.b32.xlu0 %v385, 12
        %v942 = vpop.permute.xlu0 %941
        %943 = vrot.lane.b32.xlu0 %v390, 12
        %v944 = vpop.permute.xlu0 %943
        %945 = vrot.lane.b32.xlu0 %v395, 12
        %v946 = vpop.permute.xlu0 %945
        %951 = vrot.lane.b32.xlu0 %v380, 8
        %v952 = vpop.permute.xlu0 %951
        %953 = vrot.lane.b32.xlu0 %v385, 8
        %v954 = vpop.permute.xlu0 %953
        %955 = vrot.lane.b32.xlu0 %v390, 8
        %v956 = vpop.permute.xlu0 %955
        %957 = vrot.lane.b32.xlu0 %v395, 8
        %v958 = vpop.permute.xlu0 %957
        %963 = vrot.lane.b32.xlu0 %v380, 4
        %v964 = vpop.permute.xlu0 %963
        %965 = vrot.lane.b32.xlu0 %v385, 4
        %v966 = vpop.permute.xlu0 %965
        %967 = vrot.lane.b32.xlu0 %v390, 4
        %v968 = vpop.permute.xlu0 %967
        %969 = vrot.lane.b32.xlu0 %v395, 4
        %v970 = vpop.permute.xlu0 %969
        %v975 = vcombine.low %v380, %v616
        %v976 = vcombine.high %v380, %v616
        %v978 = vunpack.c.l.s4 1983009808
        %v979 = vunpack.c.0.s8 %v978
        %v980 = vlaneseq
        %v981 = vshrl.u32 %v980, 7
        %v982 = vsub.s32 %v979, %v981
        %v983 = vrot.slane %v975, %v982
        %v985 = vunpack.c.l.s4 1983009808
        %v986 = vunpack.c.0.s8 %v985
        %v987 = vlaneseq
        %v988 = vshrl.u32 %v987, 7
        %v989 = vsub.s32 %v986, %v988
        %v990 = vrot.slane %v976, %v989
        %v991 = vcombine.low %v604, %v628
        %v992 = vcombine.high %v604, %v628
        %v994 = vunpack.c.l.s4 1983009808
        %v995 = vunpack.c.0.s8 %v994
        %v996 = vlaneseq
        %v997 = vshrl.u32 %v996, 7
        %v998 = vsub.s32 %v995, %v997
        %v999 = vrot.slane %v991, %v998
        %v1001 = vunpack.c.l.s4 1983009808
        %v1002 = vunpack.c.0.s8 %v1001
        %v1003 = vlaneseq
        %v1004 = vshrl.u32 %v1003, 7
        %v1005 = vsub.s32 %v1002, %v1004
        %v1006 = vrot.slane %v992, %v1005
        %v1007 = vcombine.low %v640, %v664
        %v1008 = vcombine.high %v640, %v664
        %v1010 = vunpack.c.l.s4 1983009808
        %v1011 = vunpack.c.0.s8 %v1010
        %v1012 = vlaneseq
        %v1013 = vshrl.u32 %v1012, 7
        %v1014 = vsub.s32 %v1011, %v1013
        %v1015 = vrot.slane %v1007, %v1014
        %v1017 = vunpack.c.l.s4 1983009808
        %v1018 = vunpack.c.0.s8 %v1017
        %v1019 = vlaneseq
        %v1020 = vshrl.u32 %v1019, 7
        %v1021 = vsub.s32 %v1018, %v1020
        %v1022 = vrot.slane %v1008, %v1021
        %v1023 = vcombine.low %v652, %v676
        %v1024 = vcombine.high %v652, %v676
        %v1026 = vunpack.c.l.s4 1983009808
        %v1027 = vunpack.c.0.s8 %v1026
        %v1028 = vlaneseq
        %v1029 = vshrl.u32 %v1028, 7
        %v1030 = vsub.s32 %v1027, %v1029
        %v1031 = vrot.slane %v1023, %v1030
        %v1033 = vunpack.c.l.s4 1983009808
        %v1034 = vunpack.c.0.s8 %v1033
        %v1035 = vlaneseq
        %v1036 = vshrl.u32 %v1035, 7
        %v1037 = vsub.s32 %v1034, %v1036
        %v1038 = vrot.slane %v1024, %v1037
        %v1039 = vcombine.low %v983, %v999
        %v1040 = vcombine.high %v983, %v999
        %v1042 = vunpack.c.l.s4 1934713408
        %v1043 = vunpack.c.0.s8 %v1042
        %v1044 = vlaneseq
        %v1045 = vshrl.u32 %v1044, 7
        %v1046 = vsub.s32 %v1043, %v1045
        %v1047 = vrot.slane %v1039, %v1046
        %v1049 = vunpack.c.l.s4 1934713408
        %v1050 = vunpack.c.0.s8 %v1049
        %v1051 = vlaneseq
        %v1052 = vshrl.u32 %v1051, 7
        %v1053 = vsub.s32 %v1050, %v1052
        %v1054 = vrot.slane %v1040, %v1053
        %v1055 = vcombine.low %v990, %v1006
        %v1056 = vcombine.high %v990, %v1006
        %v1058 = vunpack.c.l.s4 1934713408
        %v1059 = vunpack.c.0.s8 %v1058
        %v1060 = vlaneseq
        %v1061 = vshrl.u32 %v1060, 7
        %v1062 = vsub.s32 %v1059, %v1061
        %v1063 = vrot.slane %v1055, %v1062
        %v1065 = vunpack.c.l.s4 1934713408
        %v1066 = vunpack.c.0.s8 %v1065
        %v1067 = vlaneseq
        %v1068 = vshrl.u32 %v1067, 7
        %v1069 = vsub.s32 %v1066, %v1068
        %v1070 = vrot.slane %v1056, %v1069
        %v1071 = vcombine.low %v1015, %v1031
        %v1072 = vcombine.high %v1015, %v1031
        %v1074 = vunpack.c.l.s4 1934713408
        %v1075 = vunpack.c.0.s8 %v1074
        %v1076 = vlaneseq
        %v1077 = vshrl.u32 %v1076, 7
        %v1078 = vsub.s32 %v1075, %v1077
        %v1079 = vrot.slane %v1071, %v1078
        %v1081 = vunpack.c.l.s4 1934713408
        %v1082 = vunpack.c.0.s8 %v1081
        %v1083 = vlaneseq
        %v1084 = vshrl.u32 %v1083, 7
        %v1085 = vsub.s32 %v1082, %v1084
        %v1086 = vrot.slane %v1072, %v1085
        %v1087 = vcombine.low %v1022, %v1038
        %v1088 = vcombine.high %v1022, %v1038
        %v1090 = vunpack.c.l.s4 1934713408
        %v1091 = vunpack.c.0.s8 %v1090
        %v1092 = vlaneseq
        %v1093 = vshrl.u32 %v1092, 7
        %v1094 = vsub.s32 %v1091, %v1093
        %v1095 = vrot.slane %v1087, %v1094
        %v1097 = vunpack.c.l.s4 1934713408
        %v1098 = vunpack.c.0.s8 %v1097
        %v1099 = vlaneseq
        %v1100 = vshrl.u32 %v1099, 7
        %v1101 = vsub.s32 %v1098, %v1100
        %v1102 = vrot.slane %v1088, %v1101
        %v1103 = vcombine.low %v1047, %v1079
        %v1104 = vcombine.high %v1047, %v1079
        %v1105 = vcombine.low %v1054, %v1086
        %v1106 = vcombine.high %v1054, %v1086
        %v1107 = vcombine.low %v1063, %v1095
        %v1108 = vcombine.high %v1063, %v1095
        %v1109 = vcombine.low %v1070, %v1102
        %v1110 = vcombine.high %v1070, %v1102
        %v1111 = vcombine.low %v688, %v712
        %v1112 = vcombine.high %v688, %v712
        %v1114 = vunpack.c.l.s4 1983009808
        %v1115 = vunpack.c.0.s8 %v1114
        %v1116 = vlaneseq
        %v1117 = vshrl.u32 %v1116, 7
        %v1118 = vsub.s32 %v1115, %v1117
        %v1119 = vrot.slane %v1111, %v1118
        %v1121 = vunpack.c.l.s4 1983009808
        %v1122 = vunpack.c.0.s8 %v1121
        %v1123 = vlaneseq
        %v1124 = vshrl.u32 %v1123, 7
        %v1125 = vsub.s32 %v1122, %v1124
        %v1126 = vrot.slane %v1112, %v1125
        %v1127 = vcombine.low %v700, %v724
        %v1128 = vcombine.high %v700, %v724
        %v1130 = vunpack.c.l.s4 1983009808
        %v1131 = vunpack.c.0.s8 %v1130
        %v1132 = vlaneseq
        %v1133 = vshrl.u32 %v1132, 7
        %v1134 = vsub.s32 %v1131, %v1133
        %v1135 = vrot.slane %v1127, %v1134
        %v1137 = vunpack.c.l.s4 1983009808
        %v1138 = vunpack.c.0.s8 %v1137
        %v1139 = vlaneseq
        %v1140 = vshrl.u32 %v1139, 7
        %v1141 = vsub.s32 %v1138, %v1140
        %v1142 = vrot.slane %v1128, %v1141
        %v1143 = vcombine.low %v736, %v760
        %v1144 = vcombine.high %v736, %v760
        %v1146 = vunpack.c.l.s4 1983009808
        %v1147 = vunpack.c.0.s8 %v1146
        %v1148 = vlaneseq
        %v1149 = vshrl.u32 %v1148, 7
        %v1150 = vsub.s32 %v1147, %v1149
        %v1151 = vrot.slane %v1143, %v1150
        %v1153 = vunpack.c.l.s4 1983009808
        %v1154 = vunpack.c.0.s8 %v1153
        %v1155 = vlaneseq
        %v1156 = vshrl.u32 %v1155, 7
        %v1157 = vsub.s32 %v1154, %v1156
        %v1158 = vrot.slane %v1144, %v1157
        %v1159 = vcombine.low %v748, %v772
        %v1160 = vcombine.high %v748, %v772
        %v1162 = vunpack.c.l.s4 1983009808
        %v1163 = vunpack.c.0.s8 %v1162
        %v1164 = vlaneseq
        %v1165 = vshrl.u32 %v1164, 7
        %v1166 = vsub.s32 %v1163, %v1165
        %v1167 = vrot.slane %v1159, %v1166
        %v1169 = vunpack.c.l.s4 1983009808
        %v1170 = vunpack.c.0.s8 %v1169
        %v1171 = vlaneseq
        %v1172 = vshrl.u32 %v1171, 7
        %v1173 = vsub.s32 %v1170, %v1172
        %v1174 = vrot.slane %v1160, %v1173
        %v1175 = vcombine.low %v1119, %v1135
        %v1176 = vcombine.high %v1119, %v1135
        %v1178 = vunpack.c.l.s4 1934713408
        %v1179 = vunpack.c.0.s8 %v1178
        %v1180 = vlaneseq
        %v1181 = vshrl.u32 %v1180, 7
        %v1182 = vsub.s32 %v1179, %v1181
        %v1183 = vrot.slane %v1175, %v1182
        %v1185 = vunpack.c.l.s4 1934713408
        %v1186 = vunpack.c.0.s8 %v1185
        %v1187 = vlaneseq
        %v1188 = vshrl.u32 %v1187, 7
        %v1189 = vsub.s32 %v1186, %v1188
        %v1190 = vrot.slane %v1176, %v1189
        %v1191 = vcombine.low %v1126, %v1142
        %v1192 = vcombine.high %v1126, %v1142
        %v1194 = vunpack.c.l.s4 1934713408
        %v1195 = vunpack.c.0.s8 %v1194
        %v1196 = vlaneseq
        %v1197 = vshrl.u32 %v1196, 7
        %v1198 = vsub.s32 %v1195, %v1197
        %v1199 = vrot.slane %v1191, %v1198
        %v1201 = vunpack.c.l.s4 1934713408
        %v1202 = vunpack.c.0.s8 %v1201
        %v1203 = vlaneseq
        %v1204 = vshrl.u32 %v1203, 7
        %v1205 = vsub.s32 %v1202, %v1204
        %v1206 = vrot.slane %v1192, %v1205
        %v1207 = vcombine.low %v1151, %v1167
        %v1208 = vcombine.high %v1151, %v1167
        %v1210 = vunpack.c.l.s4 1934713408
        %v1211 = vunpack.c.0.s8 %v1210
        %v1212 = vlaneseq
        %v1213 = vshrl.u32 %v1212, 7
        %v1214 = vsub.s32 %v1211, %v1213
        %v1215 = vrot.slane %v1207, %v1214
        %v1217 = vunpack.c.l.s4 1934713408
        %v1218 = vunpack.c.0.s8 %v1217
        %v1219 = vlaneseq
        %v1220 = vshrl.u32 %v1219, 7
        %v1221 = vsub.s32 %v1218, %v1220
        %v1222 = vrot.slane %v1208, %v1221
        %v1223 = vcombine.low %v1158, %v1174
        %v1224 = vcombine.high %v1158, %v1174
        %v1226 = vunpack.c.l.s4 1934713408
        %v1227 = vunpack.c.0.s8 %v1226
        %v1228 = vlaneseq
        %v1229 = vshrl.u32 %v1228, 7
        %v1230 = vsub.s32 %v1227, %v1229
        %v1231 = vrot.slane %v1223, %v1230
        %v1233 = vunpack.c.l.s4 1934713408
        %v1234 = vunpack.c.0.s8 %v1233
        %v1235 = vlaneseq
        %v1236 = vshrl.u32 %v1235, 7
        %v1237 = vsub.s32 %v1234, %v1236
        %v1238 = vrot.slane %v1224, %v1237
        %v1239 = vcombine.low %v1183, %v1215
        %v1240 = vcombine.high %v1183, %v1215
        %v1241 = vcombine.low %v1190, %v1222
        %v1242 = vcombine.high %v1190, %v1222
        %v1243 = vcombine.low %v1199, %v1231
        %v1244 = vcombine.high %v1199, %v1231
        %v1245 = vcombine.low %v1206, %v1238
        %v1246 = vcombine.high %v1206, %v1238
        %v1247 = vcombine.low %v784, %v808
        %v1248 = vcombine.high %v784, %v808
        %v1250 = vunpack.c.l.s4 1983009808
        %v1251 = vunpack.c.0.s8 %v1250
        %v1252 = vlaneseq
        %v1253 = vshrl.u32 %v1252, 7
        %v1254 = vsub.s32 %v1251, %v1253
        %v1255 = vrot.slane %v1247, %v1254
        %v1257 = vunpack.c.l.s4 1983009808
        %v1258 = vunpack.c.0.s8 %v1257
        %v1259 = vlaneseq
        %v1260 = vshrl.u32 %v1259, 7
        %v1261 = vsub.s32 %v1258, %v1260
        %v1262 = vrot.slane %v1248, %v1261
        %v1263 = vcombine.low %v796, %v820
        %v1264 = vcombine.high %v796, %v820
        %v1266 = vunpack.c.l.s4 1983009808
        %v1267 = vunpack.c.0.s8 %v1266
        %v1268 = vlaneseq
        %v1269 = vshrl.u32 %v1268, 7
        %v1270 = vsub.s32 %v1267, %v1269
        %v1271 = vrot.slane %v1263, %v1270
        %v1273 = vunpack.c.l.s4 1983009808
        %v1274 = vunpack.c.0.s8 %v1273
        %v1275 = vlaneseq
        %v1276 = vshrl.u32 %v1275, 7
        %v1277 = vsub.s32 %v1274, %v1276
        %v1278 = vrot.slane %v1264, %v1277
        %v1279 = vcombine.low %v832, %v856
        %v1280 = vcombine.high %v832, %v856
        %v1282 = vunpack.c.l.s4 1983009808
        %v1283 = vunpack.c.0.s8 %v1282
        %v1284 = vlaneseq
        %v1285 = vshrl.u32 %v1284, 7
        %v1286 = vsub.s32 %v1283, %v1285
        %v1287 = vrot.slane %v1279, %v1286
        %v1289 = vunpack.c.l.s4 1983009808
        %v1290 = vunpack.c.0.s8 %v1289
        %v1291 = vlaneseq
        %v1292 = vshrl.u32 %v1291, 7
        %v1293 = vsub.s32 %v1290, %v1292
        %v1294 = vrot.slane %v1280, %v1293
        %v1295 = vcombine.low %v844, %v868
        %v1296 = vcombine.high %v844, %v868
        %v1298 = vunpack.c.l.s4 1983009808
        %v1299 = vunpack.c.0.s8 %v1298
        %v1300 = vlaneseq
        %v1301 = vshrl.u32 %v1300, 7
        %v1302 = vsub.s32 %v1299, %v1301
        %v1303 = vrot.slane %v1295, %v1302
        %v1305 = vunpack.c.l.s4 1983009808
        %v1306 = vunpack.c.0.s8 %v1305
        %v1307 = vlaneseq
        %v1308 = vshrl.u32 %v1307, 7
        %v1309 = vsub.s32 %v1306, %v1308
        %v1310 = vrot.slane %v1296, %v1309
        %v1311 = vcombine.low %v1255, %v1271
        %v1312 = vcombine.high %v1255, %v1271
        %v1314 = vunpack.c.l.s4 1934713408
        %v1315 = vunpack.c.0.s8 %v1314
        %v1316 = vlaneseq
        %v1317 = vshrl.u32 %v1316, 7
        %v1318 = vsub.s32 %v1315, %v1317
        %v1319 = vrot.slane %v1311, %v1318
        %v1321 = vunpack.c.l.s4 1934713408
        %v1322 = vunpack.c.0.s8 %v1321
        %v1323 = vlaneseq
        %v1324 = vshrl.u32 %v1323, 7
        %v1325 = vsub.s32 %v1322, %v1324
        %v1326 = vrot.slane %v1312, %v1325
        %v1327 = vcombine.low %v1262, %v1278
        %v1328 = vcombine.high %v1262, %v1278
        %v1330 = vunpack.c.l.s4 1934713408
        %v1331 = vunpack.c.0.s8 %v1330
        %v1332 = vlaneseq
        %v1333 = vshrl.u32 %v1332, 7
        %v1334 = vsub.s32 %v1331, %v1333
        %v1335 = vrot.slane %v1327, %v1334
        %v1337 = vunpack.c.l.s4 1934713408
        %v1338 = vunpack.c.0.s8 %v1337
        %v1339 = vlaneseq
        %v1340 = vshrl.u32 %v1339, 7
        %v1341 = vsub.s32 %v1338, %v1340
        %v1342 = vrot.slane %v1328, %v1341
        %v1343 = vcombine.low %v1287, %v1303
        %v1344 = vcombine.high %v1287, %v1303
        %v1346 = vunpack.c.l.s4 1934713408
        %v1347 = vunpack.c.0.s8 %v1346
        %v1348 = vlaneseq
        %v1349 = vshrl.u32 %v1348, 7
        %v1350 = vsub.s32 %v1347, %v1349
        %v1351 = vrot.slane %v1343, %v1350
        %v1353 = vunpack.c.l.s4 1934713408
        %v1354 = vunpack.c.0.s8 %v1353
        %v1355 = vlaneseq
        %v1356 = vshrl.u32 %v1355, 7
        %v1357 = vsub.s32 %v1354, %v1356
        %v1358 = vrot.slane %v1344, %v1357
        %v1359 = vcombine.low %v1294, %v1310
        %v1360 = vcombine.high %v1294, %v1310
        %v1362 = vunpack.c.l.s4 1934713408
        %v1363 = vunpack.c.0.s8 %v1362
        %v1364 = vlaneseq
        %v1365 = vshrl.u32 %v1364, 7
        %v1366 = vsub.s32 %v1363, %v1365
        %v1367 = vrot.slane %v1359, %v1366
        %v1369 = vunpack.c.l.s4 1934713408
        %v1370 = vunpack.c.0.s8 %v1369
        %v1371 = vlaneseq
        %v1372 = vshrl.u32 %v1371, 7
        %v1373 = vsub.s32 %v1370, %v1372
        %v1374 = vrot.slane %v1360, %v1373
        %v1375 = vcombine.low %v1319, %v1351
        %v1376 = vcombine.high %v1319, %v1351
        %v1377 = vcombine.low %v1326, %v1358
        %v1378 = vcombine.high %v1326, %v1358
        %v1379 = vcombine.low %v1335, %v1367
        %v1380 = vcombine.high %v1335, %v1367
        %v1381 = vcombine.low %v1342, %v1374
        %v1382 = vcombine.high %v1342, %v1374
        %v1383 = vcombine.low %v880, %v904
        %v1384 = vcombine.high %v880, %v904
        %v1386 = vunpack.c.l.s4 1983009808
        %v1387 = vunpack.c.0.s8 %v1386
        %v1388 = vlaneseq
        %v1389 = vshrl.u32 %v1388, 7
        %v1390 = vsub.s32 %v1387, %v1389
        %v1391 = vrot.slane %v1383, %v1390
        %v1393 = vunpack.c.l.s4 1983009808
        %v1394 = vunpack.c.0.s8 %v1393
        %v1395 = vlaneseq
        %v1396 = vshrl.u32 %v1395, 7
        %v1397 = vsub.s32 %v1394, %v1396
        %v1398 = vrot.slane %v1384, %v1397
        %v1399 = vcombine.low %v892, %v916
        %v1400 = vcombine.high %v892, %v916
        %v1402 = vunpack.c.l.s4 1983009808
        %v1403 = vunpack.c.0.s8 %v1402
        %v1404 = vlaneseq
        %v1405 = vshrl.u32 %v1404, 7
        %v1406 = vsub.s32 %v1403, %v1405
        %v1407 = vrot.slane %v1399, %v1406
        %v1409 = vunpack.c.l.s4 1983009808
        %v1410 = vunpack.c.0.s8 %v1409
        %v1411 = vlaneseq
        %v1412 = vshrl.u32 %v1411, 7
        %v1413 = vsub.s32 %v1410, %v1412
        %v1414 = vrot.slane %v1400, %v1413
        %v1415 = vcombine.low %v928, %v952
        %v1416 = vcombine.high %v928, %v952
        %v1418 = vunpack.c.l.s4 1983009808
        %v1419 = vunpack.c.0.s8 %v1418
        %v1420 = vlaneseq
        %v1421 = vshrl.u32 %v1420, 7
        %v1422 = vsub.s32 %v1419, %v1421
        %v1423 = vrot.slane %v1415, %v1422
        %v1425 = vunpack.c.l.s4 1983009808
        %v1426 = vunpack.c.0.s8 %v1425
        %v1427 = vlaneseq
        %v1428 = vshrl.u32 %v1427, 7
        %v1429 = vsub.s32 %v1426, %v1428
        %v1430 = vrot.slane %v1416, %v1429
        %v1431 = vcombine.low %v940, %v964
        %v1432 = vcombine.high %v940, %v964
        %v1434 = vunpack.c.l.s4 1983009808
        %v1435 = vunpack.c.0.s8 %v1434
        %v1436 = vlaneseq
        %v1437 = vshrl.u32 %v1436, 7
        %v1438 = vsub.s32 %v1435, %v1437
        %v1439 = vrot.slane %v1431, %v1438
        %v1441 = vunpack.c.l.s4 1983009808
        %v1442 = vunpack.c.0.s8 %v1441
        %v1443 = vlaneseq
        %v1444 = vshrl.u32 %v1443, 7
        %v1445 = vsub.s32 %v1442, %v1444
        %v1446 = vrot.slane %v1432, %v1445
        %v1447 = vcombine.low %v1391, %v1407
        %v1448 = vcombine.high %v1391, %v1407
        %v1450 = vunpack.c.l.s4 1934713408
        %v1451 = vunpack.c.0.s8 %v1450
        %v1452 = vlaneseq
        %v1453 = vshrl.u32 %v1452, 7
        %v1454 = vsub.s32 %v1451, %v1453
        %v1455 = vrot.slane %v1447, %v1454
        %v1457 = vunpack.c.l.s4 1934713408
        %v1458 = vunpack.c.0.s8 %v1457
        %v1459 = vlaneseq
        %v1460 = vshrl.u32 %v1459, 7
        %v1461 = vsub.s32 %v1458, %v1460
        %v1462 = vrot.slane %v1448, %v1461
        %v1463 = vcombine.low %v1398, %v1414
        %v1464 = vcombine.high %v1398, %v1414
        %v1466 = vunpack.c.l.s4 1934713408
        %v1467 = vunpack.c.0.s8 %v1466
        %v1468 = vlaneseq
        %v1469 = vshrl.u32 %v1468, 7
        %v1470 = vsub.s32 %v1467, %v1469
        %v1471 = vrot.slane %v1463, %v1470
        %v1473 = vunpack.c.l.s4 1934713408
        %v1474 = vunpack.c.0.s8 %v1473
        %v1475 = vlaneseq
        %v1476 = vshrl.u32 %v1475, 7
        %v1477 = vsub.s32 %v1474, %v1476
        %v1478 = vrot.slane %v1464, %v1477
        %v1479 = vcombine.low %v1423, %v1439
        %v1480 = vcombine.high %v1423, %v1439
        %v1482 = vunpack.c.l.s4 1934713408
        %v1483 = vunpack.c.0.s8 %v1482
        %v1484 = vlaneseq
        %v1485 = vshrl.u32 %v1484, 7
        %v1486 = vsub.s32 %v1483, %v1485
        %v1487 = vrot.slane %v1479, %v1486
        %v1489 = vunpack.c.l.s4 1934713408
        %v1490 = vunpack.c.0.s8 %v1489
        %v1491 = vlaneseq
        %v1492 = vshrl.u32 %v1491, 7
        %v1493 = vsub.s32 %v1490, %v1492
        %v1494 = vrot.slane %v1480, %v1493
        %v1495 = vcombine.low %v1430, %v1446
        %v1496 = vcombine.high %v1430, %v1446
        %v1498 = vunpack.c.l.s4 1934713408
        %v1499 = vunpack.c.0.s8 %v1498
        %v1500 = vlaneseq
        %v1501 = vshrl.u32 %v1500, 7
        %v1502 = vsub.s32 %v1499, %v1501
        %v1503 = vrot.slane %v1495, %v1502
        %v1505 = vunpack.c.l.s4 1934713408
        %v1506 = vunpack.c.0.s8 %v1505
        %v1507 = vlaneseq
        %v1508 = vshrl.u32 %v1507, 7
        %v1509 = vsub.s32 %v1506, %v1508
        %v1510 = vrot.slane %v1496, %v1509
        %v1511 = vcombine.low %v1455, %v1487
        %v1512 = vcombine.high %v1455, %v1487
        %v1513 = vcombine.low %v1462, %v1494
        %v1514 = vcombine.high %v1462, %v1494
        %v1515 = vcombine.low %v1471, %v1503
        %v1516 = vcombine.high %v1471, %v1503
        %v1517 = vcombine.low %v1478, %v1510
        %v1518 = vcombine.high %v1478, %v1510
        %v1519 = vcombine.low %v385, %v618
        %v1520 = vcombine.high %v385, %v618
        %v1522 = vunpack.c.l.s4 1983009808
        %v1523 = vunpack.c.0.s8 %v1522
        %v1524 = vlaneseq
        %v1525 = vshrl.u32 %v1524, 7
        %v1526 = vsub.s32 %v1523, %v1525
        %v1527 = vrot.slane %v1519, %v1526
        %v1529 = vunpack.c.l.s4 1983009808
        %v1530 = vunpack.c.0.s8 %v1529
        %v1531 = vlaneseq
        %v1532 = vshrl.u32 %v1531, 7
        %v1533 = vsub.s32 %v1530, %v1532
        %v1534 = vrot.slane %v1520, %v1533
        %v1535 = vcombine.low %v606, %v630
        %v1536 = vcombine.high %v606, %v630
        %v1538 = vunpack.c.l.s4 1983009808
        %v1539 = vunpack.c.0.s8 %v1538
        %v1540 = vlaneseq
        %v1541 = vshrl.u32 %v1540, 7
        %v1542 = vsub.s32 %v1539, %v1541
        %v1543 = vrot.slane %v1535, %v1542
        %v1545 = vunpack.c.l.s4 1983009808
        %v1546 = vunpack.c.0.s8 %v1545
        %v1547 = vlaneseq
        %v1548 = vshrl.u32 %v1547, 7
        %v1549 = vsub.s32 %v1546, %v1548
        %v1550 = vrot.slane %v1536, %v1549
        %v1551 = vcombine.low %v642, %v666
        %v1552 = vcombine.high %v642, %v666
        %v1554 = vunpack.c.l.s4 1983009808
        %v1555 = vunpack.c.0.s8 %v1554
        %v1556 = vlaneseq
        %v1557 = vshrl.u32 %v1556, 7
        %v1558 = vsub.s32 %v1555, %v1557
        %v1559 = vrot.slane %v1551, %v1558
        %v1561 = vunpack.c.l.s4 1983009808
        %v1562 = vunpack.c.0.s8 %v1561
        %v1563 = vlaneseq
        %v1564 = vshrl.u32 %v1563, 7
        %v1565 = vsub.s32 %v1562, %v1564
        %v1566 = vrot.slane %v1552, %v1565
        %v1567 = vcombine.low %v654, %v678
        %v1568 = vcombine.high %v654, %v678
        %v1570 = vunpack.c.l.s4 1983009808
        %v1571 = vunpack.c.0.s8 %v1570
        %v1572 = vlaneseq
        %v1573 = vshrl.u32 %v1572, 7
        %v1574 = vsub.s32 %v1571, %v1573
        %v1575 = vrot.slane %v1567, %v1574
        %v1577 = vunpack.c.l.s4 1983009808
        %v1578 = vunpack.c.0.s8 %v1577
        %v1579 = vlaneseq
        %v1580 = vshrl.u32 %v1579, 7
        %v1581 = vsub.s32 %v1578, %v1580
        %v1582 = vrot.slane %v1568, %v1581
        %v1583 = vcombine.low %v1527, %v1543
        %v1584 = vcombine.high %v1527, %v1543
        %v1586 = vunpack.c.l.s4 1934713408
        %v1587 = vunpack.c.0.s8 %v1586
        %v1588 = vlaneseq
        %v1589 = vshrl.u32 %v1588, 7
        %v1590 = vsub.s32 %v1587, %v1589
        %v1591 = vrot.slane %v1583, %v1590
        %v1593 = vunpack.c.l.s4 1934713408
        %v1594 = vunpack.c.0.s8 %v1593
        %v1595 = vlaneseq
        %v1596 = vshrl.u32 %v1595, 7
        %v1597 = vsub.s32 %v1594, %v1596
        %v1598 = vrot.slane %v1584, %v1597
        %v1599 = vcombine.low %v1534, %v1550
        %v1600 = vcombine.high %v1534, %v1550
        %v1602 = vunpack.c.l.s4 1934713408
        %v1603 = vunpack.c.0.s8 %v1602
        %v1604 = vlaneseq
        %v1605 = vshrl.u32 %v1604, 7
        %v1606 = vsub.s32 %v1603, %v1605
        %v1607 = vrot.slane %v1599, %v1606
        %v1609 = vunpack.c.l.s4 1934713408
        %v1610 = vunpack.c.0.s8 %v1609
        %v1611 = vlaneseq
        %v1612 = vshrl.u32 %v1611, 7
        %v1613 = vsub.s32 %v1610, %v1612
        %v1614 = vrot.slane %v1600, %v1613
        %v1615 = vcombine.low %v1559, %v1575
        %v1616 = vcombine.high %v1559, %v1575
        %v1618 = vunpack.c.l.s4 1934713408
        %v1619 = vunpack.c.0.s8 %v1618
        %v1620 = vlaneseq
        %v1621 = vshrl.u32 %v1620, 7
        %v1622 = vsub.s32 %v1619, %v1621
        %v1623 = vrot.slane %v1615, %v1622
        %v1625 = vunpack.c.l.s4 1934713408
        %v1626 = vunpack.c.0.s8 %v1625
        %v1627 = vlaneseq
        %v1628 = vshrl.u32 %v1627, 7
        %v1629 = vsub.s32 %v1626, %v1628
        %v1630 = vrot.slane %v1616, %v1629
        %v1631 = vcombine.low %v1566, %v1582
        %v1632 = vcombine.high %v1566, %v1582
        %v1634 = vunpack.c.l.s4 1934713408
        %v1635 = vunpack.c.0.s8 %v1634
        %v1636 = vlaneseq
        %v1637 = vshrl.u32 %v1636, 7
        %v1638 = vsub.s32 %v1635, %v1637
        %v1639 = vrot.slane %v1631, %v1638
        %v1641 = vunpack.c.l.s4 1934713408
        %v1642 = vunpack.c.0.s8 %v1641
        %v1643 = vlaneseq
        %v1644 = vshrl.u32 %v1643, 7
        %v1645 = vsub.s32 %v1642, %v1644
        %v1646 = vrot.slane %v1632, %v1645
        %v1647 = vcombine.low %v1591, %v1623
        %v1648 = vcombine.high %v1591, %v1623
        %v1649 = vcombine.low %v1598, %v1630
        %v1650 = vcombine.high %v1598, %v1630
        %v1651 = vcombine.low %v1607, %v1639
        %v1652 = vcombine.high %v1607, %v1639
        %v1653 = vcombine.low %v1614, %v1646
        %v1654 = vcombine.high %v1614, %v1646
        %v1655 = vcombine.low %v690, %v714
        %v1656 = vcombine.high %v690, %v714
        %v1658 = vunpack.c.l.s4 1983009808
        %v1659 = vunpack.c.0.s8 %v1658
        %v1660 = vlaneseq
        %v1661 = vshrl.u32 %v1660, 7
        %v1662 = vsub.s32 %v1659, %v1661
        %v1663 = vrot.slane %v1655, %v1662
        %v1665 = vunpack.c.l.s4 1983009808
        %v1666 = vunpack.c.0.s8 %v1665
        %v1667 = vlaneseq
        %v1668 = vshrl.u32 %v1667, 7
        %v1669 = vsub.s32 %v1666, %v1668
        %v1670 = vrot.slane %v1656, %v1669
        %v1671 = vcombine.low %v702, %v726
        %v1672 = vcombine.high %v702, %v726
        %v1674 = vunpack.c.l.s4 1983009808
        %v1675 = vunpack.c.0.s8 %v1674
        %v1676 = vlaneseq
        %v1677 = vshrl.u32 %v1676, 7
        %v1678 = vsub.s32 %v1675, %v1677
        %v1679 = vrot.slane %v1671, %v1678
        %v1681 = vunpack.c.l.s4 1983009808
        %v1682 = vunpack.c.0.s8 %v1681
        %v1683 = vlaneseq
        %v1684 = vshrl.u32 %v1683, 7
        %v1685 = vsub.s32 %v1682, %v1684
        %v1686 = vrot.slane %v1672, %v1685
        %v1687 = vcombine.low %v738, %v762
        %v1688 = vcombine.high %v738, %v762
        %v1690 = vunpack.c.l.s4 1983009808
        %v1691 = vunpack.c.0.s8 %v1690
        %v1692 = vlaneseq
        %v1693 = vshrl.u32 %v1692, 7
        %v1694 = vsub.s32 %v1691, %v1693
        %v1695 = vrot.slane %v1687, %v1694
        %v1697 = vunpack.c.l.s4 1983009808
        %v1698 = vunpack.c.0.s8 %v1697
        %v1699 = vlaneseq
        %v1700 = vshrl.u32 %v1699, 7
        %v1701 = vsub.s32 %v1698, %v1700
        %v1702 = vrot.slane %v1688, %v1701
        %v1703 = vcombine.low %v750, %v774
        %v1704 = vcombine.high %v750, %v774
        %v1706 = vunpack.c.l.s4 1983009808
        %v1707 = vunpack.c.0.s8 %v1706
        %v1708 = vlaneseq
        %v1709 = vshrl.u32 %v1708, 7
        %v1710 = vsub.s32 %v1707, %v1709
        %v1711 = vrot.slane %v1703, %v1710
        %v1713 = vunpack.c.l.s4 1983009808
        %v1714 = vunpack.c.0.s8 %v1713
        %v1715 = vlaneseq
        %v1716 = vshrl.u32 %v1715, 7
        %v1717 = vsub.s32 %v1714, %v1716
        %v1718 = vrot.slane %v1704, %v1717
        %v1719 = vcombine.low %v1663, %v1679
        %v1720 = vcombine.high %v1663, %v1679
        %v1722 = vunpack.c.l.s4 1934713408
        %v1723 = vunpack.c.0.s8 %v1722
        %v1724 = vlaneseq
        %v1725 = vshrl.u32 %v1724, 7
        %v1726 = vsub.s32 %v1723, %v1725
        %v1727 = vrot.slane %v1719, %v1726
        %v1729 = vunpack.c.l.s4 1934713408
        %v1730 = vunpack.c.0.s8 %v1729
        %v1731 = vlaneseq
        %v1732 = vshrl.u32 %v1731, 7
        %v1733 = vsub.s32 %v1730, %v1732
        %v1734 = vrot.slane %v1720, %v1733
        %v1735 = vcombine.low %v1670, %v1686
        %v1736 = vcombine.high %v1670, %v1686
        %v1738 = vunpack.c.l.s4 1934713408
        %v1739 = vunpack.c.0.s8 %v1738
        %v1740 = vlaneseq
        %v1741 = vshrl.u32 %v1740, 7
        %v1742 = vsub.s32 %v1739, %v1741
        %v1743 = vrot.slane %v1735, %v1742
        %v1745 = vunpack.c.l.s4 1934713408
        %v1746 = vunpack.c.0.s8 %v1745
        %v1747 = vlaneseq
        %v1748 = vshrl.u32 %v1747, 7
        %v1749 = vsub.s32 %v1746, %v1748
        %v1750 = vrot.slane %v1736, %v1749
        %v1751 = vcombine.low %v1695, %v1711
        %v1752 = vcombine.high %v1695, %v1711
        %v1754 = vunpack.c.l.s4 1934713408
        %v1755 = vunpack.c.0.s8 %v1754
        %v1756 = vlaneseq
        %v1757 = vshrl.u32 %v1756, 7
        %v1758 = vsub.s32 %v1755, %v1757
        %v1759 = vrot.slane %v1751, %v1758
        %v1761 = vunpack.c.l.s4 1934713408
        %v1762 = vunpack.c.0.s8 %v1761
        %v1763 = vlaneseq
        %v1764 = vshrl.u32 %v1763, 7
        %v1765 = vsub.s32 %v1762, %v1764
        %v1766 = vrot.slane %v1752, %v1765
        %v1767 = vcombine.low %v1702, %v1718
        %v1768 = vcombine.high %v1702, %v1718
        %v1770 = vunpack.c.l.s4 1934713408
        %v1771 = vunpack.c.0.s8 %v1770
        %v1772 = vlaneseq
        %v1773 = vshrl.u32 %v1772, 7
        %v1774 = vsub.s32 %v1771, %v1773
        %v1775 = vrot.slane %v1767, %v1774
        %v1777 = vunpack.c.l.s4 1934713408
        %v1778 = vunpack.c.0.s8 %v1777
        %v1779 = vlaneseq
        %v1780 = vshrl.u32 %v1779, 7
        %v1781 = vsub.s32 %v1778, %v1780
        %v1782 = vrot.slane %v1768, %v1781
        %v1783 = vcombine.low %v1727, %v1759
        %v1784 = vcombine.high %v1727, %v1759
        %v1785 = vcombine.low %v1734, %v1766
        %v1786 = vcombine.high %v1734, %v1766
        %v1787 = vcombine.low %v1743, %v1775
        %v1788 = vcombine.high %v1743, %v1775
        %v1789 = vcombine.low %v1750, %v1782
        %v1790 = vcombine.high %v1750, %v1782
        %v1791 = vcombine.low %v786, %v810
        %v1792 = vcombine.high %v786, %v810
        %v1794 = vunpack.c.l.s4 1983009808
        %v1795 = vunpack.c.0.s8 %v1794
        %v1796 = vlaneseq
        %v1797 = vshrl.u32 %v1796, 7
        %v1798 = vsub.s32 %v1795, %v1797
        %v1799 = vrot.slane %v1791, %v1798
        %v1801 = vunpack.c.l.s4 1983009808
        %v1802 = vunpack.c.0.s8 %v1801
        %v1803 = vlaneseq
        %v1804 = vshrl.u32 %v1803, 7
        %v1805 = vsub.s32 %v1802, %v1804
        %v1806 = vrot.slane %v1792, %v1805
        %v1807 = vcombine.low %v798, %v822
        %v1808 = vcombine.high %v798, %v822
        %v1810 = vunpack.c.l.s4 1983009808
        %v1811 = vunpack.c.0.s8 %v1810
        %v1812 = vlaneseq
        %v1813 = vshrl.u32 %v1812, 7
        %v1814 = vsub.s32 %v1811, %v1813
        %v1815 = vrot.slane %v1807, %v1814
        %v1817 = vunpack.c.l.s4 1983009808
        %v1818 = vunpack.c.0.s8 %v1817
        %v1819 = vlaneseq
        %v1820 = vshrl.u32 %v1819, 7
        %v1821 = vsub.s32 %v1818, %v1820
        %v1822 = vrot.slane %v1808, %v1821
        %v1823 = vcombine.low %v834, %v858
        %v1824 = vcombine.high %v834, %v858
        %v1826 = vunpack.c.l.s4 1983009808
        %v1827 = vunpack.c.0.s8 %v1826
        %v1828 = vlaneseq
        %v1829 = vshrl.u32 %v1828, 7
        %v1830 = vsub.s32 %v1827, %v1829
        %v1831 = vrot.slane %v1823, %v1830
        %v1833 = vunpack.c.l.s4 1983009808
        %v1834 = vunpack.c.0.s8 %v1833
        %v1835 = vlaneseq
        %v1836 = vshrl.u32 %v1835, 7
        %v1837 = vsub.s32 %v1834, %v1836
        %v1838 = vrot.slane %v1824, %v1837
        %v1839 = vcombine.low %v846, %v870
        %v1840 = vcombine.high %v846, %v870
        %v1842 = vunpack.c.l.s4 1983009808
        %v1843 = vunpack.c.0.s8 %v1842
        %v1844 = vlaneseq
        %v1845 = vshrl.u32 %v1844, 7
        %v1846 = vsub.s32 %v1843, %v1845
        %v1847 = vrot.slane %v1839, %v1846
        %v1849 = vunpack.c.l.s4 1983009808
        %v1850 = vunpack.c.0.s8 %v1849
        %v1851 = vlaneseq
        %v1852 = vshrl.u32 %v1851, 7
        %v1853 = vsub.s32 %v1850, %v1852
        %v1854 = vrot.slane %v1840, %v1853
        %v1855 = vcombine.low %v1799, %v1815
        %v1856 = vcombine.high %v1799, %v1815
        %v1858 = vunpack.c.l.s4 1934713408
        %v1859 = vunpack.c.0.s8 %v1858
        %v1860 = vlaneseq
        %v1861 = vshrl.u32 %v1860, 7
        %v1862 = vsub.s32 %v1859, %v1861
        %v1863 = vrot.slane %v1855, %v1862
        %v1865 = vunpack.c.l.s4 1934713408
        %v1866 = vunpack.c.0.s8 %v1865
        %v1867 = vlaneseq
        %v1868 = vshrl.u32 %v1867, 7
        %v1869 = vsub.s32 %v1866, %v1868
        %v1870 = vrot.slane %v1856, %v1869
        %v1871 = vcombine.low %v1806, %v1822
        %v1872 = vcombine.high %v1806, %v1822
        %v1874 = vunpack.c.l.s4 1934713408
        %v1875 = vunpack.c.0.s8 %v1874
        %v1876 = vlaneseq
        %v1877 = vshrl.u32 %v1876, 7
        %v1878 = vsub.s32 %v1875, %v1877
        %v1879 = vrot.slane %v1871, %v1878
        %v1881 = vunpack.c.l.s4 1934713408
        %v1882 = vunpack.c.0.s8 %v1881
        %v1883 = vlaneseq
        %v1884 = vshrl.u32 %v1883, 7
        %v1885 = vsub.s32 %v1882, %v1884
        %v1886 = vrot.slane %v1872, %v1885
        %v1887 = vcombine.low %v1831, %v1847
        %v1888 = vcombine.high %v1831, %v1847
        %v1890 = vunpack.c.l.s4 1934713408
        %v1891 = vunpack.c.0.s8 %v1890
        %v1892 = vlaneseq
        %v1893 = vshrl.u32 %v1892, 7
        %v1894 = vsub.s32 %v1891, %v1893
        %v1895 = vrot.slane %v1887, %v1894
        %v1897 = vunpack.c.l.s4 1934713408
        %v1898 = vunpack.c.0.s8 %v1897
        %v1899 = vlaneseq
        %v1900 = vshrl.u32 %v1899, 7
        %v1901 = vsub.s32 %v1898, %v1900
        %v1902 = vrot.slane %v1888, %v1901
        %v1903 = vcombine.low %v1838, %v1854
        %v1904 = vcombine.high %v1838, %v1854
        %v1906 = vunpack.c.l.s4 1934713408
        %v1907 = vunpack.c.0.s8 %v1906
        %v1908 = vlaneseq
        %v1909 = vshrl.u32 %v1908, 7
        %v1910 = vsub.s32 %v1907, %v1909
        %v1911 = vrot.slane %v1903, %v1910
        %v1913 = vunpack.c.l.s4 1934713408
        %v1914 = vunpack.c.0.s8 %v1913
        %v1915 = vlaneseq
        %v1916 = vshrl.u32 %v1915, 7
        %v1917 = vsub.s32 %v1914, %v1916
        %v1918 = vrot.slane %v1904, %v1917
        %v1919 = vcombine.low %v1863, %v1895
        %v1920 = vcombine.high %v1863, %v1895
        %v1921 = vcombine.low %v1870, %v1902
        %v1922 = vcombine.high %v1870, %v1902
        %v1923 = vcombine.low %v1879, %v1911
        %v1924 = vcombine.high %v1879, %v1911
        %v1925 = vcombine.low %v1886, %v1918
        %v1926 = vcombine.high %v1886, %v1918
        %v1927 = vcombine.low %v882, %v906
        %v1928 = vcombine.high %v882, %v906
        %v1930 = vunpack.c.l.s4 1983009808
        %v1931 = vunpack.c.0.s8 %v1930
        %v1932 = vlaneseq
        %v1933 = vshrl.u32 %v1932, 7
        %v1934 = vsub.s32 %v1931, %v1933
        %v1935 = vrot.slane %v1927, %v1934
        %v1937 = vunpack.c.l.s4 1983009808
        %v1938 = vunpack.c.0.s8 %v1937
        %v1939 = vlaneseq
        %v1940 = vshrl.u32 %v1939, 7
        %v1941 = vsub.s32 %v1938, %v1940
        %v1942 = vrot.slane %v1928, %v1941
        %v1943 = vcombine.low %v894, %v918
        %v1944 = vcombine.high %v894, %v918
        %v1946 = vunpack.c.l.s4 1983009808
        %v1947 = vunpack.c.0.s8 %v1946
        %v1948 = vlaneseq
        %v1949 = vshrl.u32 %v1948, 7
        %v1950 = vsub.s32 %v1947, %v1949
        %v1951 = vrot.slane %v1943, %v1950
        %v1953 = vunpack.c.l.s4 1983009808
        %v1954 = vunpack.c.0.s8 %v1953
        %v1955 = vlaneseq
        %v1956 = vshrl.u32 %v1955, 7
        %v1957 = vsub.s32 %v1954, %v1956
        %v1958 = vrot.slane %v1944, %v1957
        %v1959 = vcombine.low %v930, %v954
        %v1960 = vcombine.high %v930, %v954
        %v1962 = vunpack.c.l.s4 1983009808
        %v1963 = vunpack.c.0.s8 %v1962
        %v1964 = vlaneseq
        %v1965 = vshrl.u32 %v1964, 7
        %v1966 = vsub.s32 %v1963, %v1965
        %v1967 = vrot.slane %v1959, %v1966
        %v1969 = vunpack.c.l.s4 1983009808
        %v1970 = vunpack.c.0.s8 %v1969
        %v1971 = vlaneseq
        %v1972 = vshrl.u32 %v1971, 7
        %v1973 = vsub.s32 %v1970, %v1972
        %v1974 = vrot.slane %v1960, %v1973
        %v1975 = vcombine.low %v942, %v966
        %v1976 = vcombine.high %v942, %v966
        %v1978 = vunpack.c.l.s4 1983009808
        %v1979 = vunpack.c.0.s8 %v1978
        %v1980 = vlaneseq
        %v1981 = vshrl.u32 %v1980, 7
        %v1982 = vsub.s32 %v1979, %v1981
        %v1983 = vrot.slane %v1975, %v1982
        %v1985 = vunpack.c.l.s4 1983009808
        %v1986 = vunpack.c.0.s8 %v1985
        %v1987 = vlaneseq
        %v1988 = vshrl.u32 %v1987, 7
        %v1989 = vsub.s32 %v1986, %v1988
        %v1990 = vrot.slane %v1976, %v1989
        %v1991 = vcombine.low %v1935, %v1951
        %v1992 = vcombine.high %v1935, %v1951
        %v1994 = vunpack.c.l.s4 1934713408
        %v1995 = vunpack.c.0.s8 %v1994
        %v1996 = vlaneseq
        %v1997 = vshrl.u32 %v1996, 7
        %v1998 = vsub.s32 %v1995, %v1997
        %v1999 = vrot.slane %v1991, %v1998
        %v2001 = vunpack.c.l.s4 1934713408
        %v2002 = vunpack.c.0.s8 %v2001
        %v2003 = vlaneseq
        %v2004 = vshrl.u32 %v2003, 7
        %v2005 = vsub.s32 %v2002, %v2004
        %v2006 = vrot.slane %v1992, %v2005
        %v2007 = vcombine.low %v1942, %v1958
        %v2008 = vcombine.high %v1942, %v1958
        %v2010 = vunpack.c.l.s4 1934713408
        %v2011 = vunpack.c.0.s8 %v2010
        %v2012 = vlaneseq
        %v2013 = vshrl.u32 %v2012, 7
        %v2014 = vsub.s32 %v2011, %v2013
        %v2015 = vrot.slane %v2007, %v2014
        %v2017 = vunpack.c.l.s4 1934713408
        %v2018 = vunpack.c.0.s8 %v2017
        %v2019 = vlaneseq
        %v2020 = vshrl.u32 %v2019, 7
        %v2021 = vsub.s32 %v2018, %v2020
        %v2022 = vrot.slane %v2008, %v2021
        %v2023 = vcombine.low %v1967, %v1983
        %v2024 = vcombine.high %v1967, %v1983
        %v2026 = vunpack.c.l.s4 1934713408
        %v2027 = vunpack.c.0.s8 %v2026
        %v2028 = vlaneseq
        %v2029 = vshrl.u32 %v2028, 7
        %v2030 = vsub.s32 %v2027, %v2029
        %v2031 = vrot.slane %v2023, %v2030
        %v2033 = vunpack.c.l.s4 1934713408
        %v2034 = vunpack.c.0.s8 %v2033
        %v2035 = vlaneseq
        %v2036 = vshrl.u32 %v2035, 7
        %v2037 = vsub.s32 %v2034, %v2036
        %v2038 = vrot.slane %v2024, %v2037
        %v2039 = vcombine.low %v1974, %v1990
        %v2040 = vcombine.high %v1974, %v1990
        %v2042 = vunpack.c.l.s4 1934713408
        %v2043 = vunpack.c.0.s8 %v2042
        %v2044 = vlaneseq
        %v2045 = vshrl.u32 %v2044, 7
        %v2046 = vsub.s32 %v2043, %v2045
        %v2047 = vrot.slane %v2039, %v2046
        %v2049 = vunpack.c.l.s4 1934713408
        %v2050 = vunpack.c.0.s8 %v2049
        %v2051 = vlaneseq
        %v2052 = vshrl.u32 %v2051, 7
        %v2053 = vsub.s32 %v2050, %v2052
        %v2054 = vrot.slane %v2040, %v2053
        %v2055 = vcombine.low %v1999, %v2031
        %v2056 = vcombine.high %v1999, %v2031
        %v2057 = vcombine.low %v2006, %v2038
        %v2058 = vcombine.high %v2006, %v2038
        %v2059 = vcombine.low %v2015, %v2047
        %v2060 = vcombine.high %v2015, %v2047
        %v2061 = vcombine.low %v2022, %v2054
        %v2062 = vcombine.high %v2022, %v2054
        %v2063 = vcombine.low %v390, %v620
        %v2064 = vcombine.high %v390, %v620
        %v2066 = vunpack.c.l.s4 1983009808
        %v2067 = vunpack.c.0.s8 %v2066
        %v2068 = vlaneseq
        %v2069 = vshrl.u32 %v2068, 7
        %v2070 = vsub.s32 %v2067, %v2069
        %v2071 = vrot.slane %v2063, %v2070
        %v2073 = vunpack.c.l.s4 1983009808
        %v2074 = vunpack.c.0.s8 %v2073
        %v2075 = vlaneseq
        %v2076 = vshrl.u32 %v2075, 7
        %v2077 = vsub.s32 %v2074, %v2076
        %v2078 = vrot.slane %v2064, %v2077
        %v2079 = vcombine.low %v608, %v632
        %v2080 = vcombine.high %v608, %v632
        %v2082 = vunpack.c.l.s4 1983009808
        %v2083 = vunpack.c.0.s8 %v2082
        %v2084 = vlaneseq
        %v2085 = vshrl.u32 %v2084, 7
        %v2086 = vsub.s32 %v2083, %v2085
        %v2087 = vrot.slane %v2079, %v2086
        %v2089 = vunpack.c.l.s4 1983009808
        %v2090 = vunpack.c.0.s8 %v2089
        %v2091 = vlaneseq
        %v2092 = vshrl.u32 %v2091, 7
        %v2093 = vsub.s32 %v2090, %v2092
        %v2094 = vrot.slane %v2080, %v2093
        %v2095 = vcombine.low %v644, %v668
        %v2096 = vcombine.high %v644, %v668
        %v2098 = vunpack.c.l.s4 1983009808
        %v2099 = vunpack.c.0.s8 %v2098
        %v2100 = vlaneseq
        %v2101 = vshrl.u32 %v2100, 7
        %v2102 = vsub.s32 %v2099, %v2101
        %v2103 = vrot.slane %v2095, %v2102
        %v2105 = vunpack.c.l.s4 1983009808
        %v2106 = vunpack.c.0.s8 %v2105
        %v2107 = vlaneseq
        %v2108 = vshrl.u32 %v2107, 7
        %v2109 = vsub.s32 %v2106, %v2108
        %v2110 = vrot.slane %v2096, %v2109
        %v2111 = vcombine.low %v656, %v680
        %v2112 = vcombine.high %v656, %v680
        %v2114 = vunpack.c.l.s4 1983009808
        %v2115 = vunpack.c.0.s8 %v2114
        %v2116 = vlaneseq
        %v2117 = vshrl.u32 %v2116, 7
        %v2118 = vsub.s32 %v2115, %v2117
        %v2119 = vrot.slane %v2111, %v2118
        %v2121 = vunpack.c.l.s4 1983009808
        %v2122 = vunpack.c.0.s8 %v2121
        %v2123 = vlaneseq
        %v2124 = vshrl.u32 %v2123, 7
        %v2125 = vsub.s32 %v2122, %v2124
        %v2126 = vrot.slane %v2112, %v2125
        %v2127 = vcombine.low %v2071, %v2087
        %v2128 = vcombine.high %v2071, %v2087
        %v2130 = vunpack.c.l.s4 1934713408
        %v2131 = vunpack.c.0.s8 %v2130
        %v2132 = vlaneseq
        %v2133 = vshrl.u32 %v2132, 7
        %v2134 = vsub.s32 %v2131, %v2133
        %v2135 = vrot.slane %v2127, %v2134
        %v2137 = vunpack.c.l.s4 1934713408
        %v2138 = vunpack.c.0.s8 %v2137
        %v2139 = vlaneseq
        %v2140 = vshrl.u32 %v2139, 7
        %v2141 = vsub.s32 %v2138, %v2140
        %v2142 = vrot.slane %v2128, %v2141
        %v2143 = vcombine.low %v2078, %v2094
        %v2144 = vcombine.high %v2078, %v2094
        %v2146 = vunpack.c.l.s4 1934713408
        %v2147 = vunpack.c.0.s8 %v2146
        %v2148 = vlaneseq
        %v2149 = vshrl.u32 %v2148, 7
        %v2150 = vsub.s32 %v2147, %v2149
        %v2151 = vrot.slane %v2143, %v2150
        %v2153 = vunpack.c.l.s4 1934713408
        %v2154 = vunpack.c.0.s8 %v2153
        %v2155 = vlaneseq
        %v2156 = vshrl.u32 %v2155, 7
        %v2157 = vsub.s32 %v2154, %v2156
        %v2158 = vrot.slane %v2144, %v2157
        %v2159 = vcombine.low %v2103, %v2119
        %v2160 = vcombine.high %v2103, %v2119
        %v2162 = vunpack.c.l.s4 1934713408
        %v2163 = vunpack.c.0.s8 %v2162
        %v2164 = vlaneseq
        %v2165 = vshrl.u32 %v2164, 7
        %v2166 = vsub.s32 %v2163, %v2165
        %v2167 = vrot.slane %v2159, %v2166
        %v2169 = vunpack.c.l.s4 1934713408
        %v2170 = vunpack.c.0.s8 %v2169
        %v2171 = vlaneseq
        %v2172 = vshrl.u32 %v2171, 7
        %v2173 = vsub.s32 %v2170, %v2172
        %v2174 = vrot.slane %v2160, %v2173
        %v2175 = vcombine.low %v2110, %v2126
        %v2176 = vcombine.high %v2110, %v2126
        %v2178 = vunpack.c.l.s4 1934713408
        %v2179 = vunpack.c.0.s8 %v2178
        %v2180 = vlaneseq
        %v2181 = vshrl.u32 %v2180, 7
        %v2182 = vsub.s32 %v2179, %v2181
        %v2183 = vrot.slane %v2175, %v2182
        %v2185 = vunpack.c.l.s4 1934713408
        %v2186 = vunpack.c.0.s8 %v2185
        %v2187 = vlaneseq
        %v2188 = vshrl.u32 %v2187, 7
        %v2189 = vsub.s32 %v2186, %v2188
        %v2190 = vrot.slane %v2176, %v2189
        %v2191 = vcombine.low %v2135, %v2167
        %v2192 = vcombine.high %v2135, %v2167
        %v2193 = vcombine.low %v2142, %v2174
        %v2194 = vcombine.high %v2142, %v2174
        %v2195 = vcombine.low %v2151, %v2183
        %v2196 = vcombine.high %v2151, %v2183
        %v2197 = vcombine.low %v2158, %v2190
        %v2198 = vcombine.high %v2158, %v2190
        %v2199 = vcombine.low %v692, %v716
        %v2200 = vcombine.high %v692, %v716
        %v2202 = vunpack.c.l.s4 1983009808
        %v2203 = vunpack.c.0.s8 %v2202
        %v2204 = vlaneseq
        %v2205 = vshrl.u32 %v2204, 7
        %v2206 = vsub.s32 %v2203, %v2205
        %v2207 = vrot.slane %v2199, %v2206
        %v2209 = vunpack.c.l.s4 1983009808
        %v2210 = vunpack.c.0.s8 %v2209
        %v2211 = vlaneseq
        %v2212 = vshrl.u32 %v2211, 7
        %v2213 = vsub.s32 %v2210, %v2212
        %v2214 = vrot.slane %v2200, %v2213
        %v2215 = vcombine.low %v704, %v728
        %v2216 = vcombine.high %v704, %v728
        %v2218 = vunpack.c.l.s4 1983009808
        %v2219 = vunpack.c.0.s8 %v2218
        %v2220 = vlaneseq
        %v2221 = vshrl.u32 %v2220, 7
        %v2222 = vsub.s32 %v2219, %v2221
        %v2223 = vrot.slane %v2215, %v2222
        %v2225 = vunpack.c.l.s4 1983009808
        %v2226 = vunpack.c.0.s8 %v2225
        %v2227 = vlaneseq
        %v2228 = vshrl.u32 %v2227, 7
        %v2229 = vsub.s32 %v2226, %v2228
        %v2230 = vrot.slane %v2216, %v2229
        %v2231 = vcombine.low %v740, %v764
        %v2232 = vcombine.high %v740, %v764
        %v2234 = vunpack.c.l.s4 1983009808
        %v2235 = vunpack.c.0.s8 %v2234
        %v2236 = vlaneseq
        %v2237 = vshrl.u32 %v2236, 7
        %v2238 = vsub.s32 %v2235, %v2237
        %v2239 = vrot.slane %v2231, %v2238
        %v2241 = vunpack.c.l.s4 1983009808
        %v2242 = vunpack.c.0.s8 %v2241
        %v2243 = vlaneseq
        %v2244 = vshrl.u32 %v2243, 7
        %v2245 = vsub.s32 %v2242, %v2244
        %v2246 = vrot.slane %v2232, %v2245
        %v2247 = vcombine.low %v752, %v776
        %v2248 = vcombine.high %v752, %v776
        %v2250 = vunpack.c.l.s4 1983009808
        %v2251 = vunpack.c.0.s8 %v2250
        %v2252 = vlaneseq
        %v2253 = vshrl.u32 %v2252, 7
        %v2254 = vsub.s32 %v2251, %v2253
        %v2255 = vrot.slane %v2247, %v2254
        %v2257 = vunpack.c.l.s4 1983009808
        %v2258 = vunpack.c.0.s8 %v2257
        %v2259 = vlaneseq
        %v2260 = vshrl.u32 %v2259, 7
        %v2261 = vsub.s32 %v2258, %v2260
        %v2262 = vrot.slane %v2248, %v2261
        %v2263 = vcombine.low %v2207, %v2223
        %v2264 = vcombine.high %v2207, %v2223
        %v2266 = vunpack.c.l.s4 1934713408
        %v2267 = vunpack.c.0.s8 %v2266
        %v2268 = vlaneseq
        %v2269 = vshrl.u32 %v2268, 7
        %v2270 = vsub.s32 %v2267, %v2269
        %v2271 = vrot.slane %v2263, %v2270
        %v2273 = vunpack.c.l.s4 1934713408
        %v2274 = vunpack.c.0.s8 %v2273
        %v2275 = vlaneseq
        %v2276 = vshrl.u32 %v2275, 7
        %v2277 = vsub.s32 %v2274, %v2276
        %v2278 = vrot.slane %v2264, %v2277
        %v2279 = vcombine.low %v2214, %v2230
        %v2280 = vcombine.high %v2214, %v2230
        %v2282 = vunpack.c.l.s4 1934713408
        %v2283 = vunpack.c.0.s8 %v2282
        %v2284 = vlaneseq
        %v2285 = vshrl.u32 %v2284, 7
        %v2286 = vsub.s32 %v2283, %v2285
        %v2287 = vrot.slane %v2279, %v2286
        %v2289 = vunpack.c.l.s4 1934713408
        %v2290 = vunpack.c.0.s8 %v2289
        %v2291 = vlaneseq
        %v2292 = vshrl.u32 %v2291, 7
        %v2293 = vsub.s32 %v2290, %v2292
        %v2294 = vrot.slane %v2280, %v2293
        %v2295 = vcombine.low %v2239, %v2255
        %v2296 = vcombine.high %v2239, %v2255
        %v2298 = vunpack.c.l.s4 1934713408
        %v2299 = vunpack.c.0.s8 %v2298
        %v2300 = vlaneseq
        %v2301 = vshrl.u32 %v2300, 7
        %v2302 = vsub.s32 %v2299, %v2301
        %v2303 = vrot.slane %v2295, %v2302
        %v2305 = vunpack.c.l.s4 1934713408
        %v2306 = vunpack.c.0.s8 %v2305
        %v2307 = vlaneseq
        %v2308 = vshrl.u32 %v2307, 7
        %v2309 = vsub.s32 %v2306, %v2308
        %v2310 = vrot.slane %v2296, %v2309
        %v2311 = vcombine.low %v2246, %v2262
        %v2312 = vcombine.high %v2246, %v2262
        %v2314 = vunpack.c.l.s4 1934713408
        %v2315 = vunpack.c.0.s8 %v2314
        %v2316 = vlaneseq
        %v2317 = vshrl.u32 %v2316, 7
        %v2318 = vsub.s32 %v2315, %v2317
        %v2319 = vrot.slane %v2311, %v2318
        %v2321 = vunpack.c.l.s4 1934713408
        %v2322 = vunpack.c.0.s8 %v2321
        %v2323 = vlaneseq
        %v2324 = vshrl.u32 %v2323, 7
        %v2325 = vsub.s32 %v2322, %v2324
        %v2326 = vrot.slane %v2312, %v2325
        %v2327 = vcombine.low %v2271, %v2303
        %v2328 = vcombine.high %v2271, %v2303
        %v2329 = vcombine.low %v2278, %v2310
        %v2330 = vcombine.high %v2278, %v2310
        %v2331 = vcombine.low %v2287, %v2319
        %v2332 = vcombine.high %v2287, %v2319
        %v2333 = vcombine.low %v2294, %v2326
        %v2334 = vcombine.high %v2294, %v2326
        %v2335 = vcombine.low %v788, %v812
        %v2336 = vcombine.high %v788, %v812
        %v2338 = vunpack.c.l.s4 1983009808
        %v2339 = vunpack.c.0.s8 %v2338
        %v2340 = vlaneseq
        %v2341 = vshrl.u32 %v2340, 7
        %v2342 = vsub.s32 %v2339, %v2341
        %v2343 = vrot.slane %v2335, %v2342
        %v2345 = vunpack.c.l.s4 1983009808
        %v2346 = vunpack.c.0.s8 %v2345
        %v2347 = vlaneseq
        %v2348 = vshrl.u32 %v2347, 7
        %v2349 = vsub.s32 %v2346, %v2348
        %v2350 = vrot.slane %v2336, %v2349
        %v2351 = vcombine.low %v800, %v824
        %v2352 = vcombine.high %v800, %v824
        %v2354 = vunpack.c.l.s4 1983009808
        %v2355 = vunpack.c.0.s8 %v2354
        %v2356 = vlaneseq
        %v2357 = vshrl.u32 %v2356, 7
        %v2358 = vsub.s32 %v2355, %v2357
        %v2359 = vrot.slane %v2351, %v2358
        %v2361 = vunpack.c.l.s4 1983009808
        %v2362 = vunpack.c.0.s8 %v2361
        %v2363 = vlaneseq
        %v2364 = vshrl.u32 %v2363, 7
        %v2365 = vsub.s32 %v2362, %v2364
        %v2366 = vrot.slane %v2352, %v2365
        %v2367 = vcombine.low %v836, %v860
        %v2368 = vcombine.high %v836, %v860
        %v2370 = vunpack.c.l.s4 1983009808
        %v2371 = vunpack.c.0.s8 %v2370
        %v2372 = vlaneseq
        %v2373 = vshrl.u32 %v2372, 7
        %v2374 = vsub.s32 %v2371, %v2373
        %v2375 = vrot.slane %v2367, %v2374
        %v2377 = vunpack.c.l.s4 1983009808
        %v2378 = vunpack.c.0.s8 %v2377
        %v2379 = vlaneseq
        %v2380 = vshrl.u32 %v2379, 7
        %v2381 = vsub.s32 %v2378, %v2380
        %v2382 = vrot.slane %v2368, %v2381
        %v2383 = vcombine.low %v848, %v872
        %v2384 = vcombine.high %v848, %v872
        %v2386 = vunpack.c.l.s4 1983009808
        %v2387 = vunpack.c.0.s8 %v2386
        %v2388 = vlaneseq
        %v2389 = vshrl.u32 %v2388, 7
        %v2390 = vsub.s32 %v2387, %v2389
        %v2391 = vrot.slane %v2383, %v2390
        %v2393 = vunpack.c.l.s4 1983009808
        %v2394 = vunpack.c.0.s8 %v2393
        %v2395 = vlaneseq
        %v2396 = vshrl.u32 %v2395, 7
        %v2397 = vsub.s32 %v2394, %v2396
        %v2398 = vrot.slane %v2384, %v2397
        %v2399 = vcombine.low %v2343, %v2359
        %v2400 = vcombine.high %v2343, %v2359
        %v2402 = vunpack.c.l.s4 1934713408
        %v2403 = vunpack.c.0.s8 %v2402
        %v2404 = vlaneseq
        %v2405 = vshrl.u32 %v2404, 7
        %v2406 = vsub.s32 %v2403, %v2405
        %v2407 = vrot.slane %v2399, %v2406
        %v2409 = vunpack.c.l.s4 1934713408
        %v2410 = vunpack.c.0.s8 %v2409
        %v2411 = vlaneseq
        %v2412 = vshrl.u32 %v2411, 7
        %v2413 = vsub.s32 %v2410, %v2412
        %v2414 = vrot.slane %v2400, %v2413
        %v2415 = vcombine.low %v2350, %v2366
        %v2416 = vcombine.high %v2350, %v2366
        %v2418 = vunpack.c.l.s4 1934713408
        %v2419 = vunpack.c.0.s8 %v2418
        %v2420 = vlaneseq
        %v2421 = vshrl.u32 %v2420, 7
        %v2422 = vsub.s32 %v2419, %v2421
        %v2423 = vrot.slane %v2415, %v2422
        %v2425 = vunpack.c.l.s4 1934713408
        %v2426 = vunpack.c.0.s8 %v2425
        %v2427 = vlaneseq
        %v2428 = vshrl.u32 %v2427, 7
        %v2429 = vsub.s32 %v2426, %v2428
        %v2430 = vrot.slane %v2416, %v2429
        %v2431 = vcombine.low %v2375, %v2391
        %v2432 = vcombine.high %v2375, %v2391
        %v2434 = vunpack.c.l.s4 1934713408
        %v2435 = vunpack.c.0.s8 %v2434
        %v2436 = vlaneseq
        %v2437 = vshrl.u32 %v2436, 7
        %v2438 = vsub.s32 %v2435, %v2437
        %v2439 = vrot.slane %v2431, %v2438
        %v2441 = vunpack.c.l.s4 1934713408
        %v2442 = vunpack.c.0.s8 %v2441
        %v2443 = vlaneseq
        %v2444 = vshrl.u32 %v2443, 7
        %v2445 = vsub.s32 %v2442, %v2444
        %v2446 = vrot.slane %v2432, %v2445
        %v2447 = vcombine.low %v2382, %v2398
        %v2448 = vcombine.high %v2382, %v2398
        %v2450 = vunpack.c.l.s4 1934713408
        %v2451 = vunpack.c.0.s8 %v2450
        %v2452 = vlaneseq
        %v2453 = vshrl.u32 %v2452, 7
        %v2454 = vsub.s32 %v2451, %v2453
        %v2455 = vrot.slane %v2447, %v2454
        %v2457 = vunpack.c.l.s4 1934713408
        %v2458 = vunpack.c.0.s8 %v2457
        %v2459 = vlaneseq
        %v2460 = vshrl.u32 %v2459, 7
        %v2461 = vsub.s32 %v2458, %v2460
        %v2462 = vrot.slane %v2448, %v2461
        %v2463 = vcombine.low %v2407, %v2439
        %v2464 = vcombine.high %v2407, %v2439
        %v2465 = vcombine.low %v2414, %v2446
        %v2466 = vcombine.high %v2414, %v2446
        %v2467 = vcombine.low %v2423, %v2455
        %v2468 = vcombine.high %v2423, %v2455
        %v2469 = vcombine.low %v2430, %v2462
        %v2470 = vcombine.high %v2430, %v2462
        %v2471 = vcombine.low %v884, %v908
        %v2472 = vcombine.high %v884, %v908
        %v2474 = vunpack.c.l.s4 1983009808
        %v2475 = vunpack.c.0.s8 %v2474
        %v2476 = vlaneseq
        %v2477 = vshrl.u32 %v2476, 7
        %v2478 = vsub.s32 %v2475, %v2477
        %v2479 = vrot.slane %v2471, %v2478
        %v2481 = vunpack.c.l.s4 1983009808
        %v2482 = vunpack.c.0.s8 %v2481
        %v2483 = vlaneseq
        %v2484 = vshrl.u32 %v2483, 7
        %v2485 = vsub.s32 %v2482, %v2484
        %v2486 = vrot.slane %v2472, %v2485
        %v2487 = vcombine.low %v896, %v920
        %v2488 = vcombine.high %v896, %v920
        %v2490 = vunpack.c.l.s4 1983009808
        %v2491 = vunpack.c.0.s8 %v2490
        %v2492 = vlaneseq
        %v2493 = vshrl.u32 %v2492, 7
        %v2494 = vsub.s32 %v2491, %v2493
        %v2495 = vrot.slane %v2487, %v2494
        %v2497 = vunpack.c.l.s4 1983009808
        %v2498 = vunpack.c.0.s8 %v2497
        %v2499 = vlaneseq
        %v2500 = vshrl.u32 %v2499, 7
        %v2501 = vsub.s32 %v2498, %v2500
        %v2502 = vrot.slane %v2488, %v2501
        %v2503 = vcombine.low %v932, %v956
        %v2504 = vcombine.high %v932, %v956
        %v2506 = vunpack.c.l.s4 1983009808
        %v2507 = vunpack.c.0.s8 %v2506
        %v2508 = vlaneseq
        %v2509 = vshrl.u32 %v2508, 7
        %v2510 = vsub.s32 %v2507, %v2509
        %v2511 = vrot.slane %v2503, %v2510
        %v2513 = vunpack.c.l.s4 1983009808
        %v2514 = vunpack.c.0.s8 %v2513
        %v2515 = vlaneseq
        %v2516 = vshrl.u32 %v2515, 7
        %v2517 = vsub.s32 %v2514, %v2516
        %v2518 = vrot.slane %v2504, %v2517
        %v2519 = vcombine.low %v944, %v968
        %v2520 = vcombine.high %v944, %v968
        %v2522 = vunpack.c.l.s4 1983009808
        %v2523 = vunpack.c.0.s8 %v2522
        %v2524 = vlaneseq
        %v2525 = vshrl.u32 %v2524, 7
        %v2526 = vsub.s32 %v2523, %v2525
        %v2527 = vrot.slane %v2519, %v2526
        %v2529 = vunpack.c.l.s4 1983009808
        %v2530 = vunpack.c.0.s8 %v2529
        %v2531 = vlaneseq
        %v2532 = vshrl.u32 %v2531, 7
        %v2533 = vsub.s32 %v2530, %v2532
        %v2534 = vrot.slane %v2520, %v2533
        %v2535 = vcombine.low %v2479, %v2495
        %v2536 = vcombine.high %v2479, %v2495
        %v2538 = vunpack.c.l.s4 1934713408
        %v2539 = vunpack.c.0.s8 %v2538
        %v2540 = vlaneseq
        %v2541 = vshrl.u32 %v2540, 7
        %v2542 = vsub.s32 %v2539, %v2541
        %v2543 = vrot.slane %v2535, %v2542
        %v2545 = vunpack.c.l.s4 1934713408
        %v2546 = vunpack.c.0.s8 %v2545
        %v2547 = vlaneseq
        %v2548 = vshrl.u32 %v2547, 7
        %v2549 = vsub.s32 %v2546, %v2548
        %v2550 = vrot.slane %v2536, %v2549
        %v2551 = vcombine.low %v2486, %v2502
        %v2552 = vcombine.high %v2486, %v2502
        %v2554 = vunpack.c.l.s4 1934713408
        %v2555 = vunpack.c.0.s8 %v2554
        %v2556 = vlaneseq
        %v2557 = vshrl.u32 %v2556, 7
        %v2558 = vsub.s32 %v2555, %v2557
        %v2559 = vrot.slane %v2551, %v2558
        %v2561 = vunpack.c.l.s4 1934713408
        %v2562 = vunpack.c.0.s8 %v2561
        %v2563 = vlaneseq
        %v2564 = vshrl.u32 %v2563, 7
        %v2565 = vsub.s32 %v2562, %v2564
        %v2566 = vrot.slane %v2552, %v2565
        %v2567 = vcombine.low %v2511, %v2527
        %v2568 = vcombine.high %v2511, %v2527
        %v2570 = vunpack.c.l.s4 1934713408
        %v2571 = vunpack.c.0.s8 %v2570
        %v2572 = vlaneseq
        %v2573 = vshrl.u32 %v2572, 7
        %v2574 = vsub.s32 %v2571, %v2573
        %v2575 = vrot.slane %v2567, %v2574
        %v2577 = vunpack.c.l.s4 1934713408
        %v2578 = vunpack.c.0.s8 %v2577
        %v2579 = vlaneseq
        %v2580 = vshrl.u32 %v2579, 7
        %v2581 = vsub.s32 %v2578, %v2580
        %v2582 = vrot.slane %v2568, %v2581
        %v2583 = vcombine.low %v2518, %v2534
        %v2584 = vcombine.high %v2518, %v2534
        %v2586 = vunpack.c.l.s4 1934713408
        %v2587 = vunpack.c.0.s8 %v2586
        %v2588 = vlaneseq
        %v2589 = vshrl.u32 %v2588, 7
        %v2590 = vsub.s32 %v2587, %v2589
        %v2591 = vrot.slane %v2583, %v2590
        %v2593 = vunpack.c.l.s4 1934713408
        %v2594 = vunpack.c.0.s8 %v2593
        %v2595 = vlaneseq
        %v2596 = vshrl.u32 %v2595, 7
        %v2597 = vsub.s32 %v2594, %v2596
        %v2598 = vrot.slane %v2584, %v2597
        %v2599 = vcombine.low %v2543, %v2575
        %v2600 = vcombine.high %v2543, %v2575
        %v2601 = vcombine.low %v2550, %v2582
        %v2602 = vcombine.high %v2550, %v2582
        %v2603 = vcombine.low %v2559, %v2591
        %v2604 = vcombine.high %v2559, %v2591
        %v2605 = vcombine.low %v2566, %v2598
        %v2606 = vcombine.high %v2566, %v2598
        %v2607 = vcombine.low %v395, %v622
        %v2608 = vcombine.high %v395, %v622
        %v2610 = vunpack.c.l.s4 1983009808
        %v2611 = vunpack.c.0.s8 %v2610
        %v2612 = vlaneseq
        %v2613 = vshrl.u32 %v2612, 7
        %v2614 = vsub.s32 %v2611, %v2613
        %v2615 = vrot.slane %v2607, %v2614
        %v2617 = vunpack.c.l.s4 1983009808
        %v2618 = vunpack.c.0.s8 %v2617
        %v2619 = vlaneseq
        %v2620 = vshrl.u32 %v2619, 7
        %v2621 = vsub.s32 %v2618, %v2620
        %v2622 = vrot.slane %v2608, %v2621
        %v2623 = vcombine.low %v610, %v634
        %v2624 = vcombine.high %v610, %v634
        %v2626 = vunpack.c.l.s4 1983009808
        %v2627 = vunpack.c.0.s8 %v2626
        %v2628 = vlaneseq
        %v2629 = vshrl.u32 %v2628, 7
        %v2630 = vsub.s32 %v2627, %v2629
        %v2631 = vrot.slane %v2623, %v2630
        %v2633 = vunpack.c.l.s4 1983009808
        %v2634 = vunpack.c.0.s8 %v2633
        %v2635 = vlaneseq
        %v2636 = vshrl.u32 %v2635, 7
        %v2637 = vsub.s32 %v2634, %v2636
        %v2638 = vrot.slane %v2624, %v2637
        %v2639 = vcombine.low %v646, %v670
        %v2640 = vcombine.high %v646, %v670
        %v2642 = vunpack.c.l.s4 1983009808
        %v2643 = vunpack.c.0.s8 %v2642
        %v2644 = vlaneseq
        %v2645 = vshrl.u32 %v2644, 7
        %v2646 = vsub.s32 %v2643, %v2645
        %v2647 = vrot.slane %v2639, %v2646
        %v2649 = vunpack.c.l.s4 1983009808
        %v2650 = vunpack.c.0.s8 %v2649
        %v2651 = vlaneseq
        %v2652 = vshrl.u32 %v2651, 7
        %v2653 = vsub.s32 %v2650, %v2652
        %v2654 = vrot.slane %v2640, %v2653
        %v2655 = vcombine.low %v658, %v682
        %v2656 = vcombine.high %v658, %v682
        %v2658 = vunpack.c.l.s4 1983009808
        %v2659 = vunpack.c.0.s8 %v2658
        %v2660 = vlaneseq
        %v2661 = vshrl.u32 %v2660, 7
        %v2662 = vsub.s32 %v2659, %v2661
        %v2663 = vrot.slane %v2655, %v2662
        %v2665 = vunpack.c.l.s4 1983009808
        %v2666 = vunpack.c.0.s8 %v2665
        %v2667 = vlaneseq
        %v2668 = vshrl.u32 %v2667, 7
        %v2669 = vsub.s32 %v2666, %v2668
        %v2670 = vrot.slane %v2656, %v2669
        %v2671 = vcombine.low %v2615, %v2631
        %v2672 = vcombine.high %v2615, %v2631
        %v2674 = vunpack.c.l.s4 1934713408
        %v2675 = vunpack.c.0.s8 %v2674
        %v2676 = vlaneseq
        %v2677 = vshrl.u32 %v2676, 7
        %v2678 = vsub.s32 %v2675, %v2677
        %v2679 = vrot.slane %v2671, %v2678
        %v2681 = vunpack.c.l.s4 1934713408
        %v2682 = vunpack.c.0.s8 %v2681
        %v2683 = vlaneseq
        %v2684 = vshrl.u32 %v2683, 7
        %v2685 = vsub.s32 %v2682, %v2684
        %v2686 = vrot.slane %v2672, %v2685
        %v2687 = vcombine.low %v2622, %v2638
        %v2688 = vcombine.high %v2622, %v2638
        %v2690 = vunpack.c.l.s4 1934713408
        %v2691 = vunpack.c.0.s8 %v2690
        %v2692 = vlaneseq
        %v2693 = vshrl.u32 %v2692, 7
        %v2694 = vsub.s32 %v2691, %v2693
        %v2695 = vrot.slane %v2687, %v2694
        %v2697 = vunpack.c.l.s4 1934713408
        %v2698 = vunpack.c.0.s8 %v2697
        %v2699 = vlaneseq
        %v2700 = vshrl.u32 %v2699, 7
        %v2701 = vsub.s32 %v2698, %v2700
        %v2702 = vrot.slane %v2688, %v2701
        %v2703 = vcombine.low %v2647, %v2663
        %v2704 = vcombine.high %v2647, %v2663
        %v2706 = vunpack.c.l.s4 1934713408
        %v2707 = vunpack.c.0.s8 %v2706
        %v2708 = vlaneseq
        %v2709 = vshrl.u32 %v2708, 7
        %v2710 = vsub.s32 %v2707, %v2709
        %v2711 = vrot.slane %v2703, %v2710
        %v2713 = vunpack.c.l.s4 1934713408
        %v2714 = vunpack.c.0.s8 %v2713
        %v2715 = vlaneseq
        %v2716 = vshrl.u32 %v2715, 7
        %v2717 = vsub.s32 %v2714, %v2716
        %v2718 = vrot.slane %v2704, %v2717
        %v2719 = vcombine.low %v2654, %v2670
        %v2720 = vcombine.high %v2654, %v2670
        %v2722 = vunpack.c.l.s4 1934713408
        %v2723 = vunpack.c.0.s8 %v2722
        %v2724 = vlaneseq
        %v2725 = vshrl.u32 %v2724, 7
        %v2726 = vsub.s32 %v2723, %v2725
        %v2727 = vrot.slane %v2719, %v2726
        %v2729 = vunpack.c.l.s4 1934713408
        %v2730 = vunpack.c.0.s8 %v2729
        %v2731 = vlaneseq
        %v2732 = vshrl.u32 %v2731, 7
        %v2733 = vsub.s32 %v2730, %v2732
        %v2734 = vrot.slane %v2720, %v2733
        %v2735 = vcombine.low %v2679, %v2711
        %v2736 = vcombine.high %v2679, %v2711
        %v2737 = vcombine.low %v2686, %v2718
        %v2738 = vcombine.high %v2686, %v2718
        %v2739 = vcombine.low %v2695, %v2727
        %v2740 = vcombine.high %v2695, %v2727
        %v2741 = vcombine.low %v2702, %v2734
        %v2742 = vcombine.high %v2702, %v2734
        %v2743 = vcombine.low %v694, %v718
        %v2744 = vcombine.high %v694, %v718
        %v2746 = vunpack.c.l.s4 1983009808
        %v2747 = vunpack.c.0.s8 %v2746
        %v2748 = vlaneseq
        %v2749 = vshrl.u32 %v2748, 7
        %v2750 = vsub.s32 %v2747, %v2749
        %v2751 = vrot.slane %v2743, %v2750
        %v2753 = vunpack.c.l.s4 1983009808
        %v2754 = vunpack.c.0.s8 %v2753
        %v2755 = vlaneseq
        %v2756 = vshrl.u32 %v2755, 7
        %v2757 = vsub.s32 %v2754, %v2756
        %v2758 = vrot.slane %v2744, %v2757
        %v2759 = vcombine.low %v706, %v730
        %v2760 = vcombine.high %v706, %v730
        %v2762 = vunpack.c.l.s4 1983009808
        %v2763 = vunpack.c.0.s8 %v2762
        %v2764 = vlaneseq
        %v2765 = vshrl.u32 %v2764, 7
        %v2766 = vsub.s32 %v2763, %v2765
        %v2767 = vrot.slane %v2759, %v2766
        %v2769 = vunpack.c.l.s4 1983009808
        %v2770 = vunpack.c.0.s8 %v2769
        %v2771 = vlaneseq
        %v2772 = vshrl.u32 %v2771, 7
        %v2773 = vsub.s32 %v2770, %v2772
        %v2774 = vrot.slane %v2760, %v2773
        %v2775 = vcombine.low %v742, %v766
        %v2776 = vcombine.high %v742, %v766
        %v2778 = vunpack.c.l.s4 1983009808
        %v2779 = vunpack.c.0.s8 %v2778
        %v2780 = vlaneseq
        %v2781 = vshrl.u32 %v2780, 7
        %v2782 = vsub.s32 %v2779, %v2781
        %v2783 = vrot.slane %v2775, %v2782
        %v2785 = vunpack.c.l.s4 1983009808
        %v2786 = vunpack.c.0.s8 %v2785
        %v2787 = vlaneseq
        %v2788 = vshrl.u32 %v2787, 7
        %v2789 = vsub.s32 %v2786, %v2788
        %v2790 = vrot.slane %v2776, %v2789
        %v2791 = vcombine.low %v754, %v778
        %v2792 = vcombine.high %v754, %v778
        %v2794 = vunpack.c.l.s4 1983009808
        %v2795 = vunpack.c.0.s8 %v2794
        %v2796 = vlaneseq
        %v2797 = vshrl.u32 %v2796, 7
        %v2798 = vsub.s32 %v2795, %v2797
        %v2799 = vrot.slane %v2791, %v2798
        %v2801 = vunpack.c.l.s4 1983009808
        %v2802 = vunpack.c.0.s8 %v2801
        %v2803 = vlaneseq
        %v2804 = vshrl.u32 %v2803, 7
        %v2805 = vsub.s32 %v2802, %v2804
        %v2806 = vrot.slane %v2792, %v2805
        %v2807 = vcombine.low %v2751, %v2767
        %v2808 = vcombine.high %v2751, %v2767
        %v2810 = vunpack.c.l.s4 1934713408
        %v2811 = vunpack.c.0.s8 %v2810
        %v2812 = vlaneseq
        %v2813 = vshrl.u32 %v2812, 7
        %v2814 = vsub.s32 %v2811, %v2813
        %v2815 = vrot.slane %v2807, %v2814
        %v2817 = vunpack.c.l.s4 1934713408
        %v2818 = vunpack.c.0.s8 %v2817
        %v2819 = vlaneseq
        %v2820 = vshrl.u32 %v2819, 7
        %v2821 = vsub.s32 %v2818, %v2820
        %v2822 = vrot.slane %v2808, %v2821
        %v2823 = vcombine.low %v2758, %v2774
        %v2824 = vcombine.high %v2758, %v2774
        %v2826 = vunpack.c.l.s4 1934713408
        %v2827 = vunpack.c.0.s8 %v2826
        %v2828 = vlaneseq
        %v2829 = vshrl.u32 %v2828, 7
        %v2830 = vsub.s32 %v2827, %v2829
        %v2831 = vrot.slane %v2823, %v2830
        %v2833 = vunpack.c.l.s4 1934713408
        %v2834 = vunpack.c.0.s8 %v2833
        %v2835 = vlaneseq
        %v2836 = vshrl.u32 %v2835, 7
        %v2837 = vsub.s32 %v2834, %v2836
        %v2838 = vrot.slane %v2824, %v2837
        %v2839 = vcombine.low %v2783, %v2799
        %v2840 = vcombine.high %v2783, %v2799
        %v2842 = vunpack.c.l.s4 1934713408
        %v2843 = vunpack.c.0.s8 %v2842
        %v2844 = vlaneseq
        %v2845 = vshrl.u32 %v2844, 7
        %v2846 = vsub.s32 %v2843, %v2845
        %v2847 = vrot.slane %v2839, %v2846
        %v2849 = vunpack.c.l.s4 1934713408
        %v2850 = vunpack.c.0.s8 %v2849
        %v2851 = vlaneseq
        %v2852 = vshrl.u32 %v2851, 7
        %v2853 = vsub.s32 %v2850, %v2852
        %v2854 = vrot.slane %v2840, %v2853
        %v2855 = vcombine.low %v2790, %v2806
        %v2856 = vcombine.high %v2790, %v2806
        %v2858 = vunpack.c.l.s4 1934713408
        %v2859 = vunpack.c.0.s8 %v2858
        %v2860 = vlaneseq
        %v2861 = vshrl.u32 %v2860, 7
        %v2862 = vsub.s32 %v2859, %v2861
        %v2863 = vrot.slane %v2855, %v2862
        %v2865 = vunpack.c.l.s4 1934713408
        %v2866 = vunpack.c.0.s8 %v2865
        %v2867 = vlaneseq
        %v2868 = vshrl.u32 %v2867, 7
        %v2869 = vsub.s32 %v2866, %v2868
        %v2870 = vrot.slane %v2856, %v2869
        %v2871 = vcombine.low %v2815, %v2847
        %v2872 = vcombine.high %v2815, %v2847
        %v2873 = vcombine.low %v2822, %v2854
        %v2874 = vcombine.high %v2822, %v2854
        %v2875 = vcombine.low %v2831, %v2863
        %v2876 = vcombine.high %v2831, %v2863
        %v2877 = vcombine.low %v2838, %v2870
        %v2878 = vcombine.high %v2838, %v2870
        %v2879 = vcombine.low %v790, %v814
        %v2880 = vcombine.high %v790, %v814
        %v2882 = vunpack.c.l.s4 1983009808
        %v2883 = vunpack.c.0.s8 %v2882
        %v2884 = vlaneseq
        %v2885 = vshrl.u32 %v2884, 7
        %v2886 = vsub.s32 %v2883, %v2885
        %v2887 = vrot.slane %v2879, %v2886
        %v2889 = vunpack.c.l.s4 1983009808
        %v2890 = vunpack.c.0.s8 %v2889
        %v2891 = vlaneseq
        %v2892 = vshrl.u32 %v2891, 7
        %v2893 = vsub.s32 %v2890, %v2892
        %v2894 = vrot.slane %v2880, %v2893
        %v2895 = vcombine.low %v802, %v826
        %v2896 = vcombine.high %v802, %v826
        %v2898 = vunpack.c.l.s4 1983009808
        %v2899 = vunpack.c.0.s8 %v2898
        %v2900 = vlaneseq
        %v2901 = vshrl.u32 %v2900, 7
        %v2902 = vsub.s32 %v2899, %v2901
        %v2903 = vrot.slane %v2895, %v2902
        %v2905 = vunpack.c.l.s4 1983009808
        %v2906 = vunpack.c.0.s8 %v2905
        %v2907 = vlaneseq
        %v2908 = vshrl.u32 %v2907, 7
        %v2909 = vsub.s32 %v2906, %v2908
        %v2910 = vrot.slane %v2896, %v2909
        %v2911 = vcombine.low %v838, %v862
        %v2912 = vcombine.high %v838, %v862
        %v2914 = vunpack.c.l.s4 1983009808
        %v2915 = vunpack.c.0.s8 %v2914
        %v2916 = vlaneseq
        %v2917 = vshrl.u32 %v2916, 7
        %v2918 = vsub.s32 %v2915, %v2917
        %v2919 = vrot.slane %v2911, %v2918
        %v2921 = vunpack.c.l.s4 1983009808
        %v2922 = vunpack.c.0.s8 %v2921
        %v2923 = vlaneseq
        %v2924 = vshrl.u32 %v2923, 7
        %v2925 = vsub.s32 %v2922, %v2924
        %v2926 = vrot.slane %v2912, %v2925
        %v2927 = vcombine.low %v850, %v874
        %v2928 = vcombine.high %v850, %v874
        %v2930 = vunpack.c.l.s4 1983009808
        %v2931 = vunpack.c.0.s8 %v2930
        %v2932 = vlaneseq
        %v2933 = vshrl.u32 %v2932, 7
        %v2934 = vsub.s32 %v2931, %v2933
        %v2935 = vrot.slane %v2927, %v2934
        %v2937 = vunpack.c.l.s4 1983009808
        %v2938 = vunpack.c.0.s8 %v2937
        %v2939 = vlaneseq
        %v2940 = vshrl.u32 %v2939, 7
        %v2941 = vsub.s32 %v2938, %v2940
        %v2942 = vrot.slane %v2928, %v2941
        %v2943 = vcombine.low %v2887, %v2903
        %v2944 = vcombine.high %v2887, %v2903
        %v2946 = vunpack.c.l.s4 1934713408
        %v2947 = vunpack.c.0.s8 %v2946
        %v2948 = vlaneseq
        %v2949 = vshrl.u32 %v2948, 7
        %v2950 = vsub.s32 %v2947, %v2949
        %v2951 = vrot.slane %v2943, %v2950
        %v2953 = vunpack.c.l.s4 1934713408
        %v2954 = vunpack.c.0.s8 %v2953
        %v2955 = vlaneseq
        %v2956 = vshrl.u32 %v2955, 7
        %v2957 = vsub.s32 %v2954, %v2956
        %v2958 = vrot.slane %v2944, %v2957
        %v2959 = vcombine.low %v2894, %v2910
        %v2960 = vcombine.high %v2894, %v2910
        %v2962 = vunpack.c.l.s4 1934713408
        %v2963 = vunpack.c.0.s8 %v2962
        %v2964 = vlaneseq
        %v2965 = vshrl.u32 %v2964, 7
        %v2966 = vsub.s32 %v2963, %v2965
        %v2967 = vrot.slane %v2959, %v2966
        %v2969 = vunpack.c.l.s4 1934713408
        %v2970 = vunpack.c.0.s8 %v2969
        %v2971 = vlaneseq
        %v2972 = vshrl.u32 %v2971, 7
        %v2973 = vsub.s32 %v2970, %v2972
        %v2974 = vrot.slane %v2960, %v2973
        %v2975 = vcombine.low %v2919, %v2935
        %v2976 = vcombine.high %v2919, %v2935
        %v2978 = vunpack.c.l.s4 1934713408
        %v2979 = vunpack.c.0.s8 %v2978
        %v2980 = vlaneseq
        %v2981 = vshrl.u32 %v2980, 7
        %v2982 = vsub.s32 %v2979, %v2981
        %v2983 = vrot.slane %v2975, %v2982
        %v2985 = vunpack.c.l.s4 1934713408
        %v2986 = vunpack.c.0.s8 %v2985
        %v2987 = vlaneseq
        %v2988 = vshrl.u32 %v2987, 7
        %v2989 = vsub.s32 %v2986, %v2988
        %v2990 = vrot.slane %v2976, %v2989
        %v2991 = vcombine.low %v2926, %v2942
        %v2992 = vcombine.high %v2926, %v2942
        %v2994 = vunpack.c.l.s4 1934713408
        %v2995 = vunpack.c.0.s8 %v2994
        %v2996 = vlaneseq
        %v2997 = vshrl.u32 %v2996, 7
        %v2998 = vsub.s32 %v2995, %v2997
        %v2999 = vrot.slane %v2991, %v2998
        %v3001 = vunpack.c.l.s4 1934713408
        %v3002 = vunpack.c.0.s8 %v3001
        %v3003 = vlaneseq
        %v3004 = vshrl.u32 %v3003, 7
        %v3005 = vsub.s32 %v3002, %v3004
        %v3006 = vrot.slane %v2992, %v3005
        %v3007 = vcombine.low %v2951, %v2983
        %v3008 = vcombine.high %v2951, %v2983
        %v3009 = vcombine.low %v2958, %v2990
        %v3010 = vcombine.high %v2958, %v2990
        %v3011 = vcombine.low %v2967, %v2999
        %v3012 = vcombine.high %v2967, %v2999
        %v3013 = vcombine.low %v2974, %v3006
        %v3014 = vcombine.high %v2974, %v3006
        %v3015 = vcombine.low %v886, %v910
        %v3016 = vcombine.high %v886, %v910
        %v3018 = vunpack.c.l.s4 1983009808
        %v3019 = vunpack.c.0.s8 %v3018
        %v3020 = vlaneseq
        %v3021 = vshrl.u32 %v3020, 7
        %v3022 = vsub.s32 %v3019, %v3021
        %v3023 = vrot.slane %v3015, %v3022
        %v3025 = vunpack.c.l.s4 1983009808
        %v3026 = vunpack.c.0.s8 %v3025
        %v3027 = vlaneseq
        %v3028 = vshrl.u32 %v3027, 7
        %v3029 = vsub.s32 %v3026, %v3028
        %v3030 = vrot.slane %v3016, %v3029
        %v3031 = vcombine.low %v898, %v922
        %v3032 = vcombine.high %v898, %v922
        %v3034 = vunpack.c.l.s4 1983009808
        %v3035 = vunpack.c.0.s8 %v3034
        %v3036 = vlaneseq
        %v3037 = vshrl.u32 %v3036, 7
        %v3038 = vsub.s32 %v3035, %v3037
        %v3039 = vrot.slane %v3031, %v3038
        %v3041 = vunpack.c.l.s4 1983009808
        %v3042 = vunpack.c.0.s8 %v3041
        %v3043 = vlaneseq
        %v3044 = vshrl.u32 %v3043, 7
        %v3045 = vsub.s32 %v3042, %v3044
        %v3046 = vrot.slane %v3032, %v3045
        %v3047 = vcombine.low %v934, %v958
        %v3048 = vcombine.high %v934, %v958
        %v3050 = vunpack.c.l.s4 1983009808
        %v3051 = vunpack.c.0.s8 %v3050
        %v3052 = vlaneseq
        %v3053 = vshrl.u32 %v3052, 7
        %v3054 = vsub.s32 %v3051, %v3053
        %v3055 = vrot.slane %v3047, %v3054
        %v3057 = vunpack.c.l.s4 1983009808
        %v3058 = vunpack.c.0.s8 %v3057
        %v3059 = vlaneseq
        %v3060 = vshrl.u32 %v3059, 7
        %v3061 = vsub.s32 %v3058, %v3060
        %v3062 = vrot.slane %v3048, %v3061
        %v3063 = vcombine.low %v946, %v970
        %v3064 = vcombine.high %v946, %v970
        %v3066 = vunpack.c.l.s4 1983009808
        %v3067 = vunpack.c.0.s8 %v3066
        %v3068 = vlaneseq
        %v3069 = vshrl.u32 %v3068, 7
        %v3070 = vsub.s32 %v3067, %v3069
        %v3071 = vrot.slane %v3063, %v3070
        %v3073 = vunpack.c.l.s4 1983009808
        %v3074 = vunpack.c.0.s8 %v3073
        %v3075 = vlaneseq
        %v3076 = vshrl.u32 %v3075, 7
        %v3077 = vsub.s32 %v3074, %v3076
        %v3078 = vrot.slane %v3064, %v3077
        %v3079 = vcombine.low %v3023, %v3039
        %v3080 = vcombine.high %v3023, %v3039
        %v3082 = vunpack.c.l.s4 1934713408
        %v3083 = vunpack.c.0.s8 %v3082
        %v3084 = vlaneseq
        %v3085 = vshrl.u32 %v3084, 7
        %v3086 = vsub.s32 %v3083, %v3085
        %v3087 = vrot.slane %v3079, %v3086
        %v3089 = vunpack.c.l.s4 1934713408
        %v3090 = vunpack.c.0.s8 %v3089
        %v3091 = vlaneseq
        %v3092 = vshrl.u32 %v3091, 7
        %v3093 = vsub.s32 %v3090, %v3092
        %v3094 = vrot.slane %v3080, %v3093
        %v3095 = vcombine.low %v3030, %v3046
        %v3096 = vcombine.high %v3030, %v3046
        %v3098 = vunpack.c.l.s4 1934713408
        %v3099 = vunpack.c.0.s8 %v3098
        %v3100 = vlaneseq
        %v3101 = vshrl.u32 %v3100, 7
        %v3102 = vsub.s32 %v3099, %v3101
        %v3103 = vrot.slane %v3095, %v3102
        %v3105 = vunpack.c.l.s4 1934713408
        %v3106 = vunpack.c.0.s8 %v3105
        %v3107 = vlaneseq
        %v3108 = vshrl.u32 %v3107, 7
        %v3109 = vsub.s32 %v3106, %v3108
        %v3110 = vrot.slane %v3096, %v3109
        %v3111 = vcombine.low %v3055, %v3071
        %v3112 = vcombine.high %v3055, %v3071
        %v3114 = vunpack.c.l.s4 1934713408
        %v3115 = vunpack.c.0.s8 %v3114
        %v3116 = vlaneseq
        %v3117 = vshrl.u32 %v3116, 7
        %v3118 = vsub.s32 %v3115, %v3117
        %v3119 = vrot.slane %v3111, %v3118
        %v3121 = vunpack.c.l.s4 1934713408
        %v3122 = vunpack.c.0.s8 %v3121
        %v3123 = vlaneseq
        %v3124 = vshrl.u32 %v3123, 7
        %v3125 = vsub.s32 %v3122, %v3124
        %v3126 = vrot.slane %v3112, %v3125
        %v3127 = vcombine.low %v3062, %v3078
        %v3128 = vcombine.high %v3062, %v3078
        %v3130 = vunpack.c.l.s4 1934713408
        %v3131 = vunpack.c.0.s8 %v3130
        %v3132 = vlaneseq
        %v3133 = vshrl.u32 %v3132, 7
        %v3134 = vsub.s32 %v3131, %v3133
        %v3135 = vrot.slane %v3127, %v3134
        %v3137 = vunpack.c.l.s4 1934713408
        %v3138 = vunpack.c.0.s8 %v3137
        %v3139 = vlaneseq
        %v3140 = vshrl.u32 %v3139, 7
        %v3141 = vsub.s32 %v3138, %v3140
        %v3142 = vrot.slane %v3128, %v3141
        %v3143 = vcombine.low %v3087, %v3119
        %v3144 = vcombine.high %v3087, %v3119
        %v3145 = vcombine.low %v3094, %v3126
        %v3146 = vcombine.high %v3094, %v3126
        %v3147 = vcombine.low %v3103, %v3135
        %v3148 = vcombine.high %v3103, %v3135
        %v3149 = vcombine.low %v3110, %v3142
        %v3150 = vcombine.high %v3110, %v3142
        %s3151 = scalar_lea.vmem %s205, 160
        %3152 = vst.msk [vmem:[%s3151 + $0x4] sm:$0xff] %vm398, %v1103
        %3153 = vst.msk [vmem:[%s3151 + $0xc] sm:$0xff] %vm398, %v1239
        %3154 = vst.msk [vmem:[%s3151 + $0x14] sm:$0xff] %vm398, %v1375
        %3155 = vst.msk [vmem:[%s3151 + $0x1c] sm:$0xff] %vm398, %v1511
        %3156 = vst.msk [vmem:[%s3151 + $0x2c] sm:$0xff] %vm398, %v1104
        %3157 = vst.msk [vmem:[%s3151 + $0x34] sm:$0xff] %vm398, %v1240
        %3158 = vst.msk [vmem:[%s3151 + $0x3c] sm:$0xff] %vm398, %v1376
        %3159 = vst.msk [vmem:[%s3151 + $0x44] sm:$0xff] %vm398, %v1512
        %3160 = vst.msk [vmem:[%s3151 + $0x54] sm:$0xff] %vm398, %v1105
        %3161 = vst.msk [vmem:[%s3151 + $0x5c] sm:$0xff] %vm398, %v1241
        %3162 = vst.msk [vmem:[%s3151 + $0x64] sm:$0xff] %vm398, %v1377
        %3163 = vst.msk [vmem:[%s3151 + $0x6c] sm:$0xff] %vm398, %v1513
        %3164 = vst.msk [vmem:[%s3151 + $0x7c] sm:$0xff] %vm398, %v1106
        %3165 = vst.msk [vmem:[%s3151 + $0x84] sm:$0xff] %vm398, %v1242
        %3166 = vst.msk [vmem:[%s3151 + $0x8c] sm:$0xff] %vm398, %v1378
        %3167 = vst.msk [vmem:[%s3151 + $0x94] sm:$0xff] %vm398, %v1514
        %3168 = vst.msk [vmem:[%s3151 + $0xa4] sm:$0xff] %vm398, %v1107
        %3169 = vst.msk [vmem:[%s3151 + $0xac] sm:$0xff] %vm398, %v1243
        %3170 = vst.msk [vmem:[%s3151 + $0xb4] sm:$0xff] %vm398, %v1379
        %3171 = vst.msk [vmem:[%s3151 + $0xbc] sm:$0xff] %vm398, %v1515
        %3172 = vst.msk [vmem:[%s3151 + $0xcc] sm:$0xff] %vm398, %v1108
        %3173 = vst.msk [vmem:[%s3151 + $0xd4] sm:$0xff] %vm398, %v1244
        %3174 = vst.msk [vmem:[%s3151 + $0xdc] sm:$0xff] %vm398, %v1380
        %3175 = vst.msk [vmem:[%s3151 + $0xe4] sm:$0xff] %vm398, %v1516
        %3176 = vst.msk [vmem:[%s3151 + $0xf4] sm:$0xff] %vm398, %v1109
        %3177 = vst.msk [vmem:[%s3151 + $0xfc] sm:$0xff] %vm398, %v1245
        %3178 = vst.msk [vmem:[%s3151 + $0x104] sm:$0xff] %vm398, %v1381
        %3179 = vst.msk [vmem:[%s3151 + $0x10c] sm:$0xff] %vm398, %v1517
        %3180 = vst.msk [vmem:[%s3151 + $0x11c] sm:$0xff] %vm398, %v1110
        %3181 = vst.msk [vmem:[%s3151 + $0x124] sm:$0xff] %vm398, %v1246
        %3182 = vst.msk [vmem:[%s3151 + $0x12c] sm:$0xff] %vm398, %v1382
        %3183 = vst.msk [vmem:[%s3151 + $0x134] sm:$0xff] %vm398, %v1518
        %3184 = vst.msk [vmem:[%s3151 + $0x144] sm:$0xff] %vm398, %v1647
        %3185 = vst.msk [vmem:[%s3151 + $0x14c] sm:$0xff] %vm398, %v1783
        %3186 = vst.msk [vmem:[%s3151 + $0x154] sm:$0xff] %vm398, %v1919
        %3187 = vst.msk [vmem:[%s3151 + $0x15c] sm:$0xff] %vm398, %v2055
        %3188 = vst.msk [vmem:[%s3151 + $0x16c] sm:$0xff] %vm398, %v1648
        %3189 = vst.msk [vmem:[%s3151 + $0x174] sm:$0xff] %vm398, %v1784
        %3190 = vst.msk [vmem:[%s3151 + $0x17c] sm:$0xff] %vm398, %v1920
        %3191 = vst.msk [vmem:[%s3151 + $0x184] sm:$0xff] %vm398, %v2056
        %3192 = vst.msk [vmem:[%s3151 + $0x194] sm:$0xff] %vm398, %v1649
        %3193 = vst.msk [vmem:[%s3151 + $0x19c] sm:$0xff] %vm398, %v1785
        %3194 = vst.msk [vmem:[%s3151 + $0x1a4] sm:$0xff] %vm398, %v1921
        %3195 = vst.msk [vmem:[%s3151 + $0x1ac] sm:$0xff] %vm398, %v2057
        %3196 = vst.msk [vmem:[%s3151 + $0x1bc] sm:$0xff] %vm398, %v1650
        %3197 = vst.msk [vmem:[%s3151 + $0x1c4] sm:$0xff] %vm398, %v1786
        %3198 = vst.msk [vmem:[%s3151 + $0x1cc] sm:$0xff] %vm398, %v1922
        %3199 = vst.msk [vmem:[%s3151 + $0x1d4] sm:$0xff] %vm398, %v2058
        %3200 = vst.msk [vmem:[%s3151 + $0x1e4] sm:$0xff] %vm398, %v1651
        %3201 = vst.msk [vmem:[%s3151 + $0x1ec] sm:$0xff] %vm398, %v1787
        %3202 = vst.msk [vmem:[%s3151 + $0x1f4] sm:$0xff] %vm398, %v1923
        %3203 = vst.msk [vmem:[%s3151 + $0x1fc] sm:$0xff] %vm398, %v2059
        %3204 = vst.msk [vmem:[%s3151 + $0x20c] sm:$0xff] %vm398, %v1652
        %3205 = vst.msk [vmem:[%s3151 + $0x214] sm:$0xff] %vm398, %v1788
        %3206 = vst.msk [vmem:[%s3151 + $0x21c] sm:$0xff] %vm398, %v1924
        %3207 = vst.msk [vmem:[%s3151 + $0x224] sm:$0xff] %vm398, %v2060
        %3208 = vst.msk [vmem:[%s3151 + $0x234] sm:$0xff] %vm398, %v1653
        %3209 = vst.msk [vmem:[%s3151 + $0x23c] sm:$0xff] %vm398, %v1789
        %3210 = vst.msk [vmem:[%s3151 + $0x244] sm:$0xff] %vm398, %v1925
        %3211 = vst.msk [vmem:[%s3151 + $0x24c] sm:$0xff] %vm398, %v2061
        %3212 = vst.msk [vmem:[%s3151 + $0x25c] sm:$0xff] %vm398, %v1654
        %3213 = vst.msk [vmem:[%s3151 + $0x264] sm:$0xff] %vm398, %v1790
        %3214 = vst.msk [vmem:[%s3151 + $0x26c] sm:$0xff] %vm398, %v1926
        %3215 = vst.msk [vmem:[%s3151 + $0x274] sm:$0xff] %vm398, %v2062
        %3216 = vst.msk [vmem:[%s3151 + $0x284] sm:$0xff] %vm398, %v2191
        %3217 = vst.msk [vmem:[%s3151 + $0x28c] sm:$0xff] %vm398, %v2327
        %3218 = vst.msk [vmem:[%s3151 + $0x294] sm:$0xff] %vm398, %v2463
        %3219 = vst.msk [vmem:[%s3151 + $0x29c] sm:$0xff] %vm398, %v2599
        %3220 = vst.msk [vmem:[%s3151 + $0x2ac] sm:$0xff] %vm398, %v2192
        %3221 = vst.msk [vmem:[%s3151 + $0x2b4] sm:$0xff] %vm398, %v2328
        %3222 = vst.msk [vmem:[%s3151 + $0x2bc] sm:$0xff] %vm398, %v2464
        %3223 = vst.msk [vmem:[%s3151 + $0x2c4] sm:$0xff] %vm398, %v2600
        %3224 = vst.msk [vmem:[%s3151 + $0x2d4] sm:$0xff] %vm398, %v2193
        %3225 = vst.msk [vmem:[%s3151 + $0x2dc] sm:$0xff] %vm398, %v2329
        %3226 = vst.msk [vmem:[%s3151 + $0x2e4] sm:$0xff] %vm398, %v2465
        %3227 = vst.msk [vmem:[%s3151 + $0x2ec] sm:$0xff] %vm398, %v2601
        %3228 = vst.msk [vmem:[%s3151 + $0x2fc] sm:$0xff] %vm398, %v2194
        %3229 = vst.msk [vmem:[%s3151 + $0x304] sm:$0xff] %vm398, %v2330
        %3230 = vst.msk [vmem:[%s3151 + $0x30c] sm:$0xff] %vm398, %v2466
        %3231 = vst.msk [vmem:[%s3151 + $0x314] sm:$0xff] %vm398, %v2602
        %3232 = vst.msk [vmem:[%s3151 + $0x324] sm:$0xff] %vm398, %v2195
        %3233 = vst.msk [vmem:[%s3151 + $0x32c] sm:$0xff] %vm398, %v2331
        %3234 = vst.msk [vmem:[%s3151 + $0x334] sm:$0xff] %vm398, %v2467
        %3235 = vst.msk [vmem:[%s3151 + $0x33c] sm:$0xff] %vm398, %v2603
        %3236 = vst.msk [vmem:[%s3151 + $0x34c] sm:$0xff] %vm398, %v2196
        %3237 = vst.msk [vmem:[%s3151 + $0x354] sm:$0xff] %vm398, %v2332
        %3238 = vst.msk [vmem:[%s3151 + $0x35c] sm:$0xff] %vm398, %v2468
        %3239 = vst.msk [vmem:[%s3151 + $0x364] sm:$0xff] %vm398, %v2604
        %3240 = vst.msk [vmem:[%s3151 + $0x374] sm:$0xff] %vm398, %v2197
        %3241 = vst.msk [vmem:[%s3151 + $0x37c] sm:$0xff] %vm398, %v2333
        %3242 = vst.msk [vmem:[%s3151 + $0x384] sm:$0xff] %vm398, %v2469
        %3243 = vst.msk [vmem:[%s3151 + $0x38c] sm:$0xff] %vm398, %v2605
        %3244 = vst.msk [vmem:[%s3151 + $0x39c] sm:$0xff] %vm398, %v2198
        %3245 = vst.msk [vmem:[%s3151 + $0x3a4] sm:$0xff] %vm398, %v2334
        %3246 = vst.msk [vmem:[%s3151 + $0x3ac] sm:$0xff] %vm398, %v2470
        %3247 = vst.msk [vmem:[%s3151 + $0x3b4] sm:$0xff] %vm398, %v2606
        %3248 = vst.msk [vmem:[%s3151 + $0x3c4] sm:$0xff] %vm398, %v2735
        %3249 = vst.msk [vmem:[%s3151 + $0x3cc] sm:$0xff] %vm398, %v2871
        %3250 = vst.msk [vmem:[%s3151 + $0x3d4] sm:$0xff] %vm398, %v3007
        %3251 = vst.msk [vmem:[%s3151 + $0x3dc] sm:$0xff] %vm398, %v3143
        %3252 = vst.msk [vmem:[%s3151 + $0x3ec] sm:$0xff] %vm398, %v2736
        %3253 = vst.msk [vmem:[%s3151 + $0x3f4] sm:$0xff] %vm398, %v2872
        %3254 = vst.msk [vmem:[%s3151 + $0x3fc] sm:$0xff] %vm398, %v3008
        %3255 = vst.msk [vmem:[%s3151 + $0x404] sm:$0xff] %vm398, %v3144
        %3256 = vst.msk [vmem:[%s3151 + $0x414] sm:$0xff] %vm398, %v2737
        %3257 = vst.msk [vmem:[%s3151 + $0x41c] sm:$0xff] %vm398, %v2873
        %3258 = vst.msk [vmem:[%s3151 + $0x424] sm:$0xff] %vm398, %v3009
        %3259 = vst.msk [vmem:[%s3151 + $0x42c] sm:$0xff] %vm398, %v3145
        %3260 = vst.msk [vmem:[%s3151 + $0x43c] sm:$0xff] %vm398, %v2738
        %3261 = vst.msk [vmem:[%s3151 + $0x444] sm:$0xff] %vm398, %v2874
        %3262 = vst.msk [vmem:[%s3151 + $0x44c] sm:$0xff] %vm398, %v3010
        %3263 = vst.msk [vmem:[%s3151 + $0x454] sm:$0xff] %vm398, %v3146
        %3264 = vst.msk [vmem:[%s3151 + $0x464] sm:$0xff] %vm398, %v2739
        %3265 = vst.msk [vmem:[%s3151 + $0x46c] sm:$0xff] %vm398, %v2875
        %3266 = vst.msk [vmem:[%s3151 + $0x474] sm:$0xff] %vm398, %v3011
        %3267 = vst.msk [vmem:[%s3151 + $0x47c] sm:$0xff] %vm398, %v3147
        %3268 = vst.msk [vmem:[%s3151 + $0x48c] sm:$0xff] %vm398, %v2740
        %3269 = vst.msk [vmem:[%s3151 + $0x494] sm:$0xff] %vm398, %v2876
        %3270 = vst.msk [vmem:[%s3151 + $0x49c] sm:$0xff] %vm398, %v3012
        %3271 = vst.msk [vmem:[%s3151 + $0x4a4] sm:$0xff] %vm398, %v3148
        %3272 = vst.msk [vmem:[%s3151 + $0x4b4] sm:$0xff] %vm398, %v2741
        %3273 = vst.msk [vmem:[%s3151 + $0x4bc] sm:$0xff] %vm398, %v2877
        %3274 = vst.msk [vmem:[%s3151 + $0x4c4] sm:$0xff] %vm398, %v3013
        %3275 = vst.msk [vmem:[%s3151 + $0x4cc] sm:$0xff] %vm398, %v3149
        %3276 = vst.msk [vmem:[%s3151 + $0x4dc] sm:$0xff] %vm398, %v2742
        %3277 = vst.msk [vmem:[%s3151 + $0x4e4] sm:$0xff] %vm398, %v2878
        %3278 = vst.msk [vmem:[%s3151 + $0x4ec] sm:$0xff] %vm398, %v3014
        %3279 = vst.msk [vmem:[%s3151 + $0x4f4] sm:$0xff] %vm398, %v3150
        %p3280 = scmp.lt.s32.totalorder %s18, 1
        %s3281 = scalar_select %p3280, %s18, 1
        %s3282 = smul.addr %s3281, 200
        %s3283 = smul.addr %s3282, 8
        %s3284 = scalar_lea.vmem %s3, %s3283
        // Predicated region
        $region41: #{tpu_custom_call.1} parent=31 // pred_check
          %p3285 = pneg %p104
        $region42: #{tpu_custom_call.1} parent=31 // pred_check_branch
          %3287 = sbr.rel (%p3285) target = $region44
        $region43: #{tpu_custom_call.1} parent=31 // pred_region
          _
        $region44: #{tpu_custom_call.1} parent=31 // pred_fallthru
          _
      $region32: #{tpu_custom_call.1} parent=5 // pred_fallthru
        _
      %p3288 = scmp.le.s32.totalorder 2, %s13
      // Predicated region
      $region45: #{tpu_custom_call.1} parent=5 // pred_check
        %p3289 = pneg %p3288
      $region46: #{tpu_custom_call.1} parent=5 // pred_check_branch
        %3291 = sbr.rel (%p3289) target = $region48
      $region47: #{tpu_custom_call.1} parent=5 // pred_region
        %s3292 = ssub.s32 %s13, 2
        // Predicated region
        $region49: #{tpu_custom_call.1} parent=47 // pred_check
          %p3293 = pneg %p110
        $region50: #{tpu_custom_call.1} parent=47 // pred_check_branch
          %3295 = sbr.rel (%p3293) target = $region52
        $region51: #{tpu_custom_call.1} parent=47 // pred_region
          %p3296 = scmp.lt.s32.totalorder %s19, 1
          %s3297 = scalar_select %p3296, %s19, 1
          %s3298 = smul.addr %s3297, 200
          %s3299 = smul.addr %s3298, 8
          %s3300 = scalar_lea.vmem %s3, %s3299
        $region52: #{tpu_custom_call.1} parent=47 // pred_fallthru
          _
      $region48: #{tpu_custom_call.1} parent=5 // pred_fallthru
        _
    $region6: #{tpu_custom_call.1} parent=1 // loop_footer
      %s17 = sadd.s32 1, %s13
    $region7: #{tpu_custom_call.1} parent=1 // loop_footer_branch
      %12 = sbr.rel target = $region3
    $region8: #{tpu_custom_call.1} parent=1 // loop_exit
      _
    %3301 = vsyncpa [#allocation3], 1
    %s3302 = scalar_lea.sflag [#allocation3], 1
    %3303 = vsyncpa %s3302, 1
    %3304 = vsyncpa [#allocation5], 1

</llo_original>
